<compile_context>
chip_gen: v5e
topology: v5e:2x2
jax: 0.10.0
libtpu: 0.0.40
codegen_flags: <defaults>
</compile_context>

<pallas_src>
import functools

import jax
import jax.numpy as jnp
from jax.experimental import pallas as pl
from jax.experimental.pallas import tpu as pltpu

LN_EPS = 1e-6       # onmt.modules.LayerNorm eps
NEG_INF = -1e18     # ONMT masked_fill value


def _layer_norm(z, g, b):
    # ONMT LayerNorm: (z - mean) / (std_unbiased + eps) * a_2 + b_2
    # Exact divide here (approx reciprocal would perturb every downstream
    # activation); the approx EUP reciprocal is reserved for the softmax denom.
    d = z.shape[-1]
    mu = jnp.mean(z, axis=-1, keepdims=True)
    var = jnp.sum((z - mu) ** 2, axis=-1, keepdims=True) * (1.0 / (d - 1))
    return (z - mu) / (jnp.sqrt(var) + LN_EPS) * g + b


def encoder_layer_kernel(x_ref, bias_ref,
                         ln1g_ref, ln1b_ref,
                         wqkv_ref, bqkv_ref,
                         wo_ref, bo_ref,
                         ln2g_ref, ln2b_ref,
                         w1_ref, b1_ref, w2_ref, b2_ref,
                         out_ref, *, head_count):
    f32 = jnp.float32
    bf16 = jnp.bfloat16

    x = x_ref[0].astype(f32)                  # [S, D]
    key_bias = bias_ref[0]                    # [1, S] additive key-padding bias
    S, D = x.shape
    dph = D // head_count

    # ---------------- self-attention sub-layer ----------------
    xn = _layer_norm(x, ln1g_ref[...], ln1b_ref[...])             # f32 [S, D]

    # Fused dense QKV projection: one [S, D] @ [D, 3D] bf16 matmul, f32 acc.
    # (query scale dph^-0.5 and query bias scale are folded into wqkv/bqkv)
    qkv = jnp.dot(xn.astype(bf16), wqkv_ref[...],
                  preferred_element_type=f32) + bqkv_ref[...]     # [S, 3D] f32
    q = qkv[:, :D]
    k = qkv[:, D:2 * D]
    v = qkv[:, 2 * D:]

    # Per-head attention core (static unrolled loop over heads; scores stay f32).
    ctx_parts = []
    for h in range(head_count):
        lo, hi = h * dph, (h + 1) * dph
        q_h = q[:, lo:hi].astype(bf16)                            # [S, dph]
        k_h = k[:, lo:hi].astype(bf16)
        v_h = v[:, lo:hi].astype(bf16)
        s_h = jnp.einsum('qe,ke->qk', q_h, k_h,
                         preferred_element_type=f32)              # [S, S]
        s_h = s_h + key_bias                                      # == masked_fill(-1e18) in f32
        s_h = s_h - jnp.max(s_h, axis=-1, keepdims=True)          # stable softmax
        p_h = jnp.exp(s_h)
        p_h = p_h * pl.reciprocal(jnp.sum(p_h, axis=-1, keepdims=True), approx=True)
        # attention dropout is identity in eval mode
        ctx_parts.append(jnp.einsum('qk,ke->qe', p_h.astype(bf16), v_h,
                                    preferred_element_type=f32))  # [S, dph]

    # Merge heads once along the lane dim (head-major, matching ONMT unshape),
    # then a single dense output projection with K = D.
    ctx = jnp.concatenate(ctx_parts, axis=-1)                     # [S, D]
    mid = jnp.dot(ctx.astype(bf16), wo_ref[...],
                  preferred_element_type=f32) + bo_ref[...]       # [S, D]
    out1 = mid + x                                                # dropout(mid) + inputs

    # ---------------- position-wise feed-forward sub-layer ----------------
    xn2 = _layer_norm(out1, ln2g_ref[...], ln2b_ref[...])
    inter = jnp.dot(xn2.astype(bf16), w1_ref[...],
                    preferred_element_type=f32) + b1_ref[...]     # [S, H] f32
    inter = jnp.maximum(inter, 0.0).astype(bf16)                  # carry ReLU output in bf16
    ffn = jnp.dot(inter, w2_ref[...],
                  preferred_element_type=f32) + b2_ref[...]
    out_ref[0] = (ffn + out1).astype(out_ref.dtype)


def prepare_params(params, head_count):
    """One-time weight preprocessing (call at parameter-load time, NOT per step):
    bf16 casts for all matmul weights, fused [D, 3D] QKV weight, and the
    dph^-0.5 query scale folded into the query weight/bias."""
    bf16, f32 = jnp.bfloat16, jnp.float32
    D = params["wq"].shape[0]
    dph = D // head_count
    scale = float(dph) ** -0.5
    wqkv = jnp.concatenate(
        [params["wq"] * scale, params["wk"], params["wv"]], axis=1).astype(bf16)
    bqkv = jnp.concatenate(
        [params["bq"] * scale, params["bk"], params["bv"]], axis=1).astype(f32)
    return {
        "wqkv": wqkv, "bqkv": bqkv,
        "wo": params["wo"].astype(bf16), "bo": params["bo"].astype(f32),
        "w1": params["w1"].astype(bf16), "b1": params["b1"].astype(f32),
        "w2": params["w2"].astype(bf16), "b2": params["b2"].astype(f32),
        "ln1_g": params["ln1_g"].astype(f32), "ln1_b": params["ln1_b"].astype(f32),
        "ln2_g": params["ln2_g"].astype(f32), "ln2_b": params["ln2_b"].astype(f32),
    }


def transformer_encoder_layer(x, mask, prep, head_count):
    """mask: ONMT-style [B, S, S] broadcast key-padding mask (or [B, 1, S] / [B, S]);
    1.0 marks padded key positions.  NOTE: a [B, S, S] mask is assumed to be a
    key-padding mask broadcast over queries (ONMT encoder self-attention)."""
    B, S, D = x.shape
    H_hidden = prep["w1"].shape[1]
    assert D % head_count == 0, "d_model must be divisible by head_count"

    # --- mask -> additive key-padding bias [B, 1, S] (S x less DMA than [B,S,S]) ---
    if mask.ndim == 3:
        key_mask = mask[:, 0, :]
    else:
        key_mask = mask
    attn_bias = (key_mask.astype(jnp.float32) * NEG_INF).reshape(B, 1, S)

    def vmem():
        # whole-array VMEM resident: single copy, never pipelined/double-buffered
        return pl.BlockSpec(memory_space=pltpu.MemorySpace.VMEM)

    in_specs = [
        pl.BlockSpec((1, S, D), lambda b: (b, 0, 0)),    # x (per-batch block)
        pl.BlockSpec((1, 1, S), lambda b: (b, 0, 0)),    # attention key bias
        vmem(), vmem(),                                  # ln1 gamma / beta
        vmem(), vmem(),                                  # wqkv, bqkv
        vmem(), vmem(),                                  # wo, bo
        vmem(), vmem(),                                  # ln2 gamma / beta
        vmem(), vmem(), vmem(), vmem(),                  # w1, b1, w2, b2
    ]

    # --- VMEM budget: estimate need, cap at physical VMEM minus headroom ---
    weight_bytes = (prep["wqkv"].size + prep["wo"].size
                    + prep["w1"].size + prep["w2"].size) * 2 \
        + (prep["bqkv"].size + prep["bo"].size + prep["b1"].size + prep["b2"].size
           + prep["ln1_g"].size + prep["ln1_b"].size
           + prep["ln2_g"].size + prep["ln2_b"].size) * 4
    act_bytes = 4 * (3 * S * D                      # fused qkv
                     + 5 * S * D                    # x, xn, ctx, mid, out1
                     + head_count * S * S           # per-head scores (budget all)
                     + S * H_hidden) \
        + 2 * S * H_hidden                          # bf16 relu intermediate
    io_bytes = 2 * 4 * (2 * S * D + S)              # double-buffered x / out / bias
    need = weight_bytes + act_bytes + io_bytes
    try:
        cap = pltpu.get_tpu_info().vmem_capacity_bytes
    except Exception:
        cap = 128 * 1024 * 1024
    headroom = 12 * 1024 * 1024
    vmem_limit = int(min(cap - headroom, max(32 * 1024 * 1024, 2 * need)))

    # --- advisory cost estimate for the XLA scheduler ---
    flops = B * (8 * S * D * D + 4 * S * S * D + 4 * S * D * H_hidden)
    cost = pl.CostEstimate(
        flops=int(flops),
        transcendentals=int(B * (head_count * S * S + head_count * S + 4 * S)),
        bytes_accessed=int(weight_bytes + B * (2 * S * D + S) * 4),
    )

    kernel = functools.partial(encoder_layer_kernel, head_count=head_count)
    return pl.pallas_call(
        kernel,
        out_shape=jax.ShapeDtypeStruct((B, S, D), x.dtype),
        grid=(B,),
        in_specs=in_specs,
        out_specs=pl.BlockSpec((1, S, D), lambda b: (b, 0, 0)),
        compiler_params=pltpu.CompilerParams(
            dimension_semantics=("parallel",),
            vmem_limit_bytes=vmem_limit),
        cost_estimate=cost,
    )(x, attn_bias,
      prep["ln1_g"], prep["ln1_b"],
      prep["wqkv"], prep["bqkv"], prep["wo"], prep["bo"],
      prep["ln2_g"], prep["ln2_b"],
      prep["w1"], prep["b1"], prep["w2"], prep["b2"])


def init_params(key, size, hidden_size):
    # Deterministic synthetic init (weights stored as [in, out]; y = x @ W + b,
    # equivalent to nn.Linear with W = weight.T).
    ks = jax.random.split(key, 12)
    s = 0.02
    return {
        "ln1_g": jnp.ones((1, size), jnp.float32),
        "ln1_b": jnp.zeros((1, size), jnp.float32),
        "wq": jax.random.normal(ks[0], (size, size), jnp.float32) * s,
        "bq": jax.random.normal(ks[1], (1, size), jnp.float32) * s,
        "wk": jax.random.normal(ks[2], (size, size), jnp.float32) * s,
        "bk": jax.random.normal(ks[3], (1, size), jnp.float32) * s,
        "wv": jax.random.normal(ks[4], (size, size), jnp.float32) * s,
        "bv": jax.random.normal(ks[5], (1, size), jnp.float32) * s,
        "wo": jax.random.normal(ks[6], (size, size), jnp.float32) * s,
        "bo": jax.random.normal(ks[7], (1, size), jnp.float32) * s,
        "ln2_g": jnp.ones((1, size), jnp.float32),
        "ln2_b": jnp.zeros((1, size), jnp.float32),
        "w1": jax.random.normal(ks[8], (size, hidden_size), jnp.float32) * s,
        "b1": jax.random.normal(ks[9], (1, hidden_size), jnp.float32) * s,
        "w2": jax.random.normal(ks[10], (hidden_size, size), jnp.float32) * s,
        "b2": jax.random.normal(ks[11], (1, size), jnp.float32) * s,
    }


def reference_forward(x, mask, params, head_count):
    # Pure-JAX f32 reference of the ONMT forward (eval mode), for a sanity check.
    B, S, D = x.shape
    dph = D // head_count

    def ln(z, g, b):
        mu = jnp.mean(z, axis=-1, keepdims=True)
        var = jnp.sum((z - mu) ** 2, axis=-1, keepdims=True) / (D - 1)
        return (z - mu) / (jnp.sqrt(var) + LN_EPS) * g + b

    xn = ln(x, params["ln1_g"], params["ln1_b"])
    q = xn @ params["wq"] + params["bq"]
    k = xn @ params["wk"] + params["bk"]
    v = xn @ params["wv"] + params["bv"]

    def split(t):
        return t.reshape(B, S, head_count, dph).transpose(0, 2, 1, 3)

    qh, kh, vh = split(q) * (dph ** -0.5), split(k), split(v)
    scores = jnp.einsum('bhqd,bhkd->bhqk', qh, kh)
    m3 = mask if mask.ndim == 3 else jnp.broadcast_to(mask[:, None, :], (B, S, S))
    scores = jnp.where(m3[:, None, :, :] > 0, NEG_INF, scores)
    p = jax.nn.softmax(scores, axis=-1)
    ctx = jnp.einsum('bhqk,bhkd->bhqd', p, vh).transpose(0, 2, 1, 3).reshape(B, S, D)
    out1 = ctx @ params["wo"] + params["bo"] + x
    xn2 = ln(out1, params["ln2_g"], params["ln2_b"])
    inter = jax.nn.relu(xn2 @ params["w1"] + params["b1"])
    return inter @ params["w2"] + params["b2"] + out1


if __name__ == "__main__":
    B, S, D, HIDDEN, HEADS = 2, 8, 64, 128, 8   # dim_per_head = 8

    key = jax.random.PRNGKey(0)
    k_x, k_p = jax.random.split(key)
    x = jax.random.normal(k_x, (B, S, D), jnp.float32)

    # padding mask: batch 0 has full length S, batch 1 has 2 padded positions
    lengths = jnp.array([S, S - 2])
    pos = jnp.arange(S)
    pad = (pos[None, :] >= lengths[:, None]).astype(jnp.float32)              # [B, S]
    mask = jnp.broadcast_to(pad[:, None, :], (B, S, S)).astype(jnp.float32)   # ONMT-style

    params = init_params(k_p, D, HIDDEN)
    prep = prepare_params(params, HEADS)        # one-time weight prep (hoisted)

    out = transformer_encoder_layer(x, mask, prep, HEADS)
    jax.block_until_ready(out)
    assert out.shape == (B, S, D)

    ref = reference_forward(x, mask, params, HEADS)
    err = float(jnp.max(jnp.abs(out - ref)))
    assert err < 5e-2, f"max abs err vs f32 reference too large: {err}"
    print("KERNEL_OK")
</pallas_src>

<mosaic_0001>
module attributes {stable_mosaic.version = 11 : i64} {
  func.func @encoder_layer_kernel(%arg0: i32, %arg1: memref<1x8x64xf32, #tpu.memory_space<vmem>>, %arg2: memref<1x1x8xf32, #tpu.memory_space<vmem>>, %arg3: memref<1x64xf32, #tpu.memory_space<vmem>>, %arg4: memref<1x64xf32, #tpu.memory_space<vmem>>, %arg5: memref<64x192xbf16, #tpu.memory_space<vmem>>, %arg6: memref<1x192xf32, #tpu.memory_space<vmem>>, %arg7: memref<64x64xbf16, #tpu.memory_space<vmem>>, %arg8: memref<1x64xf32, #tpu.memory_space<vmem>>, %arg9: memref<1x64xf32, #tpu.memory_space<vmem>>, %arg10: memref<1x64xf32, #tpu.memory_space<vmem>>, %arg11: memref<64x128xbf16, #tpu.memory_space<vmem>>, %arg12: memref<1x128xf32, #tpu.memory_space<vmem>>, %arg13: memref<128x64xbf16, #tpu.memory_space<vmem>>, %arg14: memref<1x64xf32, #tpu.memory_space<vmem>>, %arg15: memref<1x8x64xf32, #tpu.memory_space<vmem>>) attributes {dimension_semantics = [#tpu.dimension_semantics<parallel>], iteration_bounds = array<i64: 2>, scalar_prefetch = 0 : i64, scratch_operands = 0 : i64, tpu.core_type = #tpu.core_type<tc>, window_params = [{transform_indices = @transform_0, window_bounds = array<i64: 1, 8, 64>}, {transform_indices = @transform_1, window_bounds = array<i64: 1, 1, 8>}, {pipeline_mode = #tpu.pipeline_mode<synchronous>, transform_indices = @transform_2, window_bounds = array<i64: 1, 64>}, {pipeline_mode = #tpu.pipeline_mode<synchronous>, transform_indices = @transform_3, window_bounds = array<i64: 1, 64>}, {pipeline_mode = #tpu.pipeline_mode<synchronous>, transform_indices = @transform_4, window_bounds = array<i64: 64, 192>}, {pipeline_mode = #tpu.pipeline_mode<synchronous>, transform_indices = @transform_5, window_bounds = array<i64: 1, 192>}, {pipeline_mode = #tpu.pipeline_mode<synchronous>, transform_indices = @transform_6, window_bounds = array<i64: 64, 64>}, {pipeline_mode = #tpu.pipeline_mode<synchronous>, transform_indices = @transform_7, window_bounds = array<i64: 1, 64>}, {pipeline_mode = #tpu.pipeline_mode<synchronous>, transform_indices = @transform_8, window_bounds = array<i64: 1, 64>}, {pipeline_mode = #tpu.pipeline_mode<synchronous>, transform_indices = @transform_9, window_bounds = array<i64: 1, 64>}, {pipeline_mode = #tpu.pipeline_mode<synchronous>, transform_indices = @transform_10, window_bounds = array<i64: 64, 128>}, {pipeline_mode = #tpu.pipeline_mode<synchronous>, transform_indices = @transform_11, window_bounds = array<i64: 1, 128>}, {pipeline_mode = #tpu.pipeline_mode<synchronous>, transform_indices = @transform_12, window_bounds = array<i64: 128, 64>}, {pipeline_mode = #tpu.pipeline_mode<synchronous>, transform_indices = @transform_13, window_bounds = array<i64: 1, 64>}, {transform_indices = @transform_14, window_bounds = array<i64: 1, 8, 64>}]} {
    %c0 = arith.constant 0 : index
    %c0_0 = arith.constant 0 : index
    %c0_1 = arith.constant 0 : index
    %0 = vector.load %arg1[%c0, %c0_0, %c0_1] : memref<1x8x64xf32, #tpu.memory_space<vmem>>, vector<1x8x64xf32>
    %1 = vector.shape_cast %0 : vector<1x8x64xf32> to vector<8x64xf32>
    %c0_2 = arith.constant 0 : index
    %c0_3 = arith.constant 0 : index
    %c0_4 = arith.constant 0 : index
    %2 = vector.load %arg2[%c0_2, %c0_3, %c0_4] : memref<1x1x8xf32, #tpu.memory_space<vmem>>, vector<1x1x8xf32>
    %3 = vector.shape_cast %2 : vector<1x1x8xf32> to vector<1x8xf32>
    %c0_5 = arith.constant 0 : index
    %c0_6 = arith.constant 0 : index
    %4 = vector.load %arg3[%c0_5, %c0_6] : memref<1x64xf32, #tpu.memory_space<vmem>>, vector<1x64xf32>
    %c0_7 = arith.constant 0 : index
    %c0_8 = arith.constant 0 : index
    %5 = vector.load %arg4[%c0_7, %c0_8] : memref<1x64xf32, #tpu.memory_space<vmem>>, vector<1x64xf32>
    %cst = arith.constant dense<0.000000e+00> : vector<8xf32>
    %6 = vector.multi_reduction <add>, %1, %cst [1] : vector<8x64xf32> to vector<8xf32>
    %7 = vector.shape_cast %6 : vector<8xf32> to vector<8x1xf32>
    %cst_9 = arith.constant 6.400000e+01 : f32
    %8 = vector.broadcast %cst_9 : f32 to vector<8x1xf32>
    %9 = arith.divf %7, %8 : vector<8x1xf32>
    %10 = vector.broadcast %9 : vector<8x1xf32> to vector<8x64xf32>
    %11 = arith.subf %1, %10 : vector<8x64xf32>
    %12 = arith.mulf %11, %11 : vector<8x64xf32>
    %cst_10 = arith.constant dense<0.000000e+00> : vector<8xf32>
    %13 = vector.multi_reduction <add>, %12, %cst_10 [1] : vector<8x64xf32> to vector<8xf32>
    %14 = vector.shape_cast %13 : vector<8xf32> to vector<8x1xf32>
    %cst_11 = arith.constant 0.0158730168 : f32
    %15 = vector.broadcast %cst_11 : f32 to vector<8x1xf32>
    %16 = arith.mulf %14, %15 : vector<8x1xf32>
    %17 = vector.broadcast %9 : vector<8x1xf32> to vector<8x64xf32>
    %18 = arith.subf %1, %17 : vector<8x64xf32>
    %19 = math.sqrt %16 : vector<8x1xf32>
    %cst_12 = arith.constant 9.99999997E-7 : f32
    %20 = vector.broadcast %cst_12 : f32 to vector<8x1xf32>
    %21 = arith.addf %19, %20 : vector<8x1xf32>
    %22 = vector.broadcast %21 : vector<8x1xf32> to vector<8x64xf32>
    %23 = arith.divf %18, %22 : vector<8x64xf32>
    %24 = vector.broadcast %4 : vector<1x64xf32> to vector<8x64xf32>
    %25 = arith.mulf %23, %24 : vector<8x64xf32>
    %26 = vector.broadcast %5 : vector<1x64xf32> to vector<8x64xf32>
    %27 = arith.addf %25, %26 : vector<8x64xf32>
    %28 = arith.truncf %27 : vector<8x64xf32> to vector<8x64xbf16>
    %c0_13 = arith.constant 0 : index
    %c0_14 = arith.constant 0 : index
    %29 = vector.load %arg5[%c0_13, %c0_14] : memref<64x192xbf16, #tpu.memory_space<vmem>>, vector<64x192xbf16>
    %cst_15 = arith.constant dense<0.000000e+00> : vector<8x192xf32>
    %30 = tpu.matmul %28, %29, %cst_15 {dimension_numbers = #tpu.dot_dimension_numbers<[1], [0], [0], [1], [0, 0, 1, 1], [], []>} : vector<8x64xbf16>, vector<64x192xbf16>, vector<8x192xf32> -> vector<8x192xf32>
    %c0_16 = arith.constant 0 : index
    %c0_17 = arith.constant 0 : index
    %31 = vector.load %arg6[%c0_16, %c0_17] : memref<1x192xf32, #tpu.memory_space<vmem>>, vector<1x192xf32>
    %32 = vector.broadcast %31 : vector<1x192xf32> to vector<8x192xf32>
    %33 = arith.addf %30, %32 : vector<8x192xf32>
    %34 = vector.extract_strided_slice %33 {offsets = [0, 0], sizes = [8, 64], strides = [1, 1]} : vector<8x192xf32> to vector<8x64xf32>
    %35 = vector.extract_strided_slice %33 {offsets = [0, 64], sizes = [8, 64], strides = [1, 1]} : vector<8x192xf32> to vector<8x64xf32>
    %36 = vector.extract_strided_slice %33 {offsets = [0, 128], sizes = [8, 64], strides = [1, 1]} : vector<8x192xf32> to vector<8x64xf32>
    %37 = vector.extract_strided_slice %34 {offsets = [0, 0], sizes = [8, 8], strides = [1, 1]} : vector<8x64xf32> to vector<8x8xf32>
    %38 = arith.truncf %37 : vector<8x8xf32> to vector<8x8xbf16>
    %39 = vector.extract_strided_slice %35 {offsets = [0, 0], sizes = [8, 8], strides = [1, 1]} : vector<8x64xf32> to vector<8x8xf32>
    %40 = arith.truncf %39 : vector<8x8xf32> to vector<8x8xbf16>
    %41 = vector.extract_strided_slice %36 {offsets = [0, 0], sizes = [8, 8], strides = [1, 1]} : vector<8x64xf32> to vector<8x8xf32>
    %42 = arith.truncf %41 : vector<8x8xf32> to vector<8x8xbf16>
    "tpu.trace_start"() <{level = 10 : i32, message = "qe,ke->qk"}> : () -> ()
    %cst_18 = arith.constant dense<0.000000e+00> : vector<8x8xf32>
    %43 = tpu.matmul %38, %40, %cst_18 {dimension_numbers = #tpu.dot_dimension_numbers<[1], [1], [0], [0], [0, 0, 1, 0], [], []>} : vector<8x8xbf16>, vector<8x8xbf16>, vector<8x8xf32> -> vector<8x8xf32>
    "tpu.trace_stop"() : () -> ()
    %44 = vector.broadcast %3 : vector<1x8xf32> to vector<8x8xf32>
    %45 = arith.addf %43, %44 : vector<8x8xf32>
    %cst_19 = arith.constant dense<0xFF800000> : vector<8xf32>
    %46 = vector.multi_reduction <maximumf>, %45, %cst_19 [1] : vector<8x8xf32> to vector<8xf32>
    %47 = vector.shape_cast %46 : vector<8xf32> to vector<8x1xf32>
    %48 = vector.broadcast %47 : vector<8x1xf32> to vector<8x8xf32>
    %49 = arith.subf %45, %48 : vector<8x8xf32>
    %50 = math.exp %49 : vector<8x8xf32>
    %cst_20 = arith.constant dense<0.000000e+00> : vector<8xf32>
    %51 = vector.multi_reduction <add>, %50, %cst_20 [1] : vector<8x8xf32> to vector<8xf32>
    %52 = vector.shape_cast %51 : vector<8xf32> to vector<8x1xf32>
    %53 = tpu.reciprocal %52 {approx = true} : vector<8x1xf32> -> vector<8x1xf32>
    %54 = vector.broadcast %53 : vector<8x1xf32> to vector<8x8xf32>
    %55 = arith.mulf %50, %54 : vector<8x8xf32>
    %56 = arith.truncf %55 : vector<8x8xf32> to vector<8x8xbf16>
    "tpu.trace_start"() <{level = 10 : i32, message = "qk,ke->qe"}> : () -> ()
    %cst_21 = arith.constant dense<0.000000e+00> : vector<8x8xf32>
    %57 = tpu.matmul %56, %42, %cst_21 {dimension_numbers = #tpu.dot_dimension_numbers<[1], [0], [0], [1], [0, 0, 1, 1], [], []>} : vector<8x8xbf16>, vector<8x8xbf16>, vector<8x8xf32> -> vector<8x8xf32>
    "tpu.trace_stop"() : () -> ()
    %58 = vector.extract_strided_slice %34 {offsets = [0, 8], sizes = [8, 8], strides = [1, 1]} : vector<8x64xf32> to vector<8x8xf32>
    %59 = arith.truncf %58 : vector<8x8xf32> to vector<8x8xbf16>
    %60 = vector.extract_strided_slice %35 {offsets = [0, 8], sizes = [8, 8], strides = [1, 1]} : vector<8x64xf32> to vector<8x8xf32>
    %61 = arith.truncf %60 : vector<8x8xf32> to vector<8x8xbf16>
    %62 = vector.extract_strided_slice %36 {offsets = [0, 8], sizes = [8, 8], strides = [1, 1]} : vector<8x64xf32> to vector<8x8xf32>
    %63 = arith.truncf %62 : vector<8x8xf32> to vector<8x8xbf16>
    "tpu.trace_start"() <{level = 10 : i32, message = "qe,ke->qk"}> : () -> ()
    %cst_22 = arith.constant dense<0.000000e+00> : vector<8x8xf32>
    %64 = tpu.matmul %59, %61, %cst_22 {dimension_numbers = #tpu.dot_dimension_numbers<[1], [1], [0], [0], [0, 0, 1, 0], [], []>} : vector<8x8xbf16>, vector<8x8xbf16>, vector<8x8xf32> -> vector<8x8xf32>
    "tpu.trace_stop"() : () -> ()
    %65 = vector.broadcast %3 : vector<1x8xf32> to vector<8x8xf32>
    %66 = arith.addf %64, %65 : vector<8x8xf32>
    %cst_23 = arith.constant dense<0xFF800000> : vector<8xf32>
    %67 = vector.multi_reduction <maximumf>, %66, %cst_23 [1] : vector<8x8xf32> to vector<8xf32>
    %68 = vector.shape_cast %67 : vector<8xf32> to vector<8x1xf32>
    %69 = vector.broadcast %68 : vector<8x1xf32> to vector<8x8xf32>
    %70 = arith.subf %66, %69 : vector<8x8xf32>
    %71 = math.exp %70 : vector<8x8xf32>
    %cst_24 = arith.constant dense<0.000000e+00> : vector<8xf32>
    %72 = vector.multi_reduction <add>, %71, %cst_24 [1] : vector<8x8xf32> to vector<8xf32>
    %73 = vector.shape_cast %72 : vector<8xf32> to vector<8x1xf32>
    %74 = tpu.reciprocal %73 {approx = true} : vector<8x1xf32> -> vector<8x1xf32>
    %75 = vector.broadcast %74 : vector<8x1xf32> to vector<8x8xf32>
    %76 = arith.mulf %71, %75 : vector<8x8xf32>
    %77 = arith.truncf %76 : vector<8x8xf32> to vector<8x8xbf16>
    "tpu.trace_start"() <{level = 10 : i32, message = "qk,ke->qe"}> : () -> ()
    %cst_25 = arith.constant dense<0.000000e+00> : vector<8x8xf32>
    %78 = tpu.matmul %77, %63, %cst_25 {dimension_numbers = #tpu.dot_dimension_numbers<[1], [0], [0], [1], [0, 0, 1, 1], [], []>} : vector<8x8xbf16>, vector<8x8xbf16>, vector<8x8xf32> -> vector<8x8xf32>
    "tpu.trace_stop"() : () -> ()
    %79 = vector.extract_strided_slice %34 {offsets = [0, 16], sizes = [8, 8], strides = [1, 1]} : vector<8x64xf32> to vector<8x8xf32>
    %80 = arith.truncf %79 : vector<8x8xf32> to vector<8x8xbf16>
    %81 = vector.extract_strided_slice %35 {offsets = [0, 16], sizes = [8, 8], strides = [1, 1]} : vector<8x64xf32> to vector<8x8xf32>
    %82 = arith.truncf %81 : vector<8x8xf32> to vector<8x8xbf16>
    %83 = vector.extract_strided_slice %36 {offsets = [0, 16], sizes = [8, 8], strides = [1, 1]} : vector<8x64xf32> to vector<8x8xf32>
    %84 = arith.truncf %83 : vector<8x8xf32> to vector<8x8xbf16>
    "tpu.trace_start"() <{level = 10 : i32, message = "qe,ke->qk"}> : () -> ()
    %cst_26 = arith.constant dense<0.000000e+00> : vector<8x8xf32>
    %85 = tpu.matmul %80, %82, %cst_26 {dimension_numbers = #tpu.dot_dimension_numbers<[1], [1], [0], [0], [0, 0, 1, 0], [], []>} : vector<8x8xbf16>, vector<8x8xbf16>, vector<8x8xf32> -> vector<8x8xf32>
    "tpu.trace_stop"() : () -> ()
    %86 = vector.broadcast %3 : vector<1x8xf32> to vector<8x8xf32>
    %87 = arith.addf %85, %86 : vector<8x8xf32>
    %cst_27 = arith.constant dense<0xFF800000> : vector<8xf32>
    %88 = vector.multi_reduction <maximumf>, %87, %cst_27 [1] : vector<8x8xf32> to vector<8xf32>
    %89 = vector.shape_cast %88 : vector<8xf32> to vector<8x1xf32>
    %90 = vector.broadcast %89 : vector<8x1xf32> to vector<8x8xf32>
    %91 = arith.subf %87, %90 : vector<8x8xf32>
    %92 = math.exp %91 : vector<8x8xf32>
    %cst_28 = arith.constant dense<0.000000e+00> : vector<8xf32>
    %93 = vector.multi_reduction <add>, %92, %cst_28 [1] : vector<8x8xf32> to vector<8xf32>
    %94 = vector.shape_cast %93 : vector<8xf32> to vector<8x1xf32>
    %95 = tpu.reciprocal %94 {approx = true} : vector<8x1xf32> -> vector<8x1xf32>
    %96 = vector.broadcast %95 : vector<8x1xf32> to vector<8x8xf32>
    %97 = arith.mulf %92, %96 : vector<8x8xf32>
    %98 = arith.truncf %97 : vector<8x8xf32> to vector<8x8xbf16>
    "tpu.trace_start"() <{level = 10 : i32, message = "qk,ke->qe"}> : () -> ()
    %cst_29 = arith.constant dense<0.000000e+00> : vector<8x8xf32>
    %99 = tpu.matmul %98, %84, %cst_29 {dimension_numbers = #tpu.dot_dimension_numbers<[1], [0], [0], [1], [0, 0, 1, 1], [], []>} : vector<8x8xbf16>, vector<8x8xbf16>, vector<8x8xf32> -> vector<8x8xf32>
    "tpu.trace_stop"() : () -> ()
    %100 = vector.extract_strided_slice %34 {offsets = [0, 24], sizes = [8, 8], strides = [1, 1]} : vector<8x64xf32> to vector<8x8xf32>
    %101 = arith.truncf %100 : vector<8x8xf32> to vector<8x8xbf16>
    %102 = vector.extract_strided_slice %35 {offsets = [0, 24], sizes = [8, 8], strides = [1, 1]} : vector<8x64xf32> to vector<8x8xf32>
    %103 = arith.truncf %102 : vector<8x8xf32> to vector<8x8xbf16>
    %104 = vector.extract_strided_slice %36 {offsets = [0, 24], sizes = [8, 8], strides = [1, 1]} : vector<8x64xf32> to vector<8x8xf32>
    %105 = arith.truncf %104 : vector<8x8xf32> to vector<8x8xbf16>
    "tpu.trace_start"() <{level = 10 : i32, message = "qe,ke->qk"}> : () -> ()
    %cst_30 = arith.constant dense<0.000000e+00> : vector<8x8xf32>
    %106 = tpu.matmul %101, %103, %cst_30 {dimension_numbers = #tpu.dot_dimension_numbers<[1], [1], [0], [0], [0, 0, 1, 0], [], []>} : vector<8x8xbf16>, vector<8x8xbf16>, vector<8x8xf32> -> vector<8x8xf32>
    "tpu.trace_stop"() : () -> ()
    %107 = vector.broadcast %3 : vector<1x8xf32> to vector<8x8xf32>
    %108 = arith.addf %106, %107 : vector<8x8xf32>
    %cst_31 = arith.constant dense<0xFF800000> : vector<8xf32>
    %109 = vector.multi_reduction <maximumf>, %108, %cst_31 [1] : vector<8x8xf32> to vector<8xf32>
    %110 = vector.shape_cast %109 : vector<8xf32> to vector<8x1xf32>
    %111 = vector.broadcast %110 : vector<8x1xf32> to vector<8x8xf32>
    %112 = arith.subf %108, %111 : vector<8x8xf32>
    %113 = math.exp %112 : vector<8x8xf32>
    %cst_32 = arith.constant dense<0.000000e+00> : vector<8xf32>
    %114 = vector.multi_reduction <add>, %113, %cst_32 [1] : vector<8x8xf32> to vector<8xf32>
    %115 = vector.shape_cast %114 : vector<8xf32> to vector<8x1xf32>
    %116 = tpu.reciprocal %115 {approx = true} : vector<8x1xf32> -> vector<8x1xf32>
    %117 = vector.broadcast %116 : vector<8x1xf32> to vector<8x8xf32>
    %118 = arith.mulf %113, %117 : vector<8x8xf32>
    %119 = arith.truncf %118 : vector<8x8xf32> to vector<8x8xbf16>
    "tpu.trace_start"() <{level = 10 : i32, message = "qk,ke->qe"}> : () -> ()
    %cst_33 = arith.constant dense<0.000000e+00> : vector<8x8xf32>
    %120 = tpu.matmul %119, %105, %cst_33 {dimension_numbers = #tpu.dot_dimension_numbers<[1], [0], [0], [1], [0, 0, 1, 1], [], []>} : vector<8x8xbf16>, vector<8x8xbf16>, vector<8x8xf32> -> vector<8x8xf32>
    "tpu.trace_stop"() : () -> ()
    %121 = vector.extract_strided_slice %34 {offsets = [0, 32], sizes = [8, 8], strides = [1, 1]} : vector<8x64xf32> to vector<8x8xf32>
    %122 = arith.truncf %121 : vector<8x8xf32> to vector<8x8xbf16>
    %123 = vector.extract_strided_slice %35 {offsets = [0, 32], sizes = [8, 8], strides = [1, 1]} : vector<8x64xf32> to vector<8x8xf32>
    %124 = arith.truncf %123 : vector<8x8xf32> to vector<8x8xbf16>
    %125 = vector.extract_strided_slice %36 {offsets = [0, 32], sizes = [8, 8], strides = [1, 1]} : vector<8x64xf32> to vector<8x8xf32>
    %126 = arith.truncf %125 : vector<8x8xf32> to vector<8x8xbf16>
    "tpu.trace_start"() <{level = 10 : i32, message = "qe,ke->qk"}> : () -> ()
    %cst_34 = arith.constant dense<0.000000e+00> : vector<8x8xf32>
    %127 = tpu.matmul %122, %124, %cst_34 {dimension_numbers = #tpu.dot_dimension_numbers<[1], [1], [0], [0], [0, 0, 1, 0], [], []>} : vector<8x8xbf16>, vector<8x8xbf16>, vector<8x8xf32> -> vector<8x8xf32>
    "tpu.trace_stop"() : () -> ()
    %128 = vector.broadcast %3 : vector<1x8xf32> to vector<8x8xf32>
    %129 = arith.addf %127, %128 : vector<8x8xf32>
    %cst_35 = arith.constant dense<0xFF800000> : vector<8xf32>
    %130 = vector.multi_reduction <maximumf>, %129, %cst_35 [1] : vector<8x8xf32> to vector<8xf32>
    %131 = vector.shape_cast %130 : vector<8xf32> to vector<8x1xf32>
    %132 = vector.broadcast %131 : vector<8x1xf32> to vector<8x8xf32>
    %133 = arith.subf %129, %132 : vector<8x8xf32>
    %134 = math.exp %133 : vector<8x8xf32>
    %cst_36 = arith.constant dense<0.000000e+00> : vector<8xf32>
    %135 = vector.multi_reduction <add>, %134, %cst_36 [1] : vector<8x8xf32> to vector<8xf32>
    %136 = vector.shape_cast %135 : vector<8xf32> to vector<8x1xf32>
    %137 = tpu.reciprocal %136 {approx = true} : vector<8x1xf32> -> vector<8x1xf32>
    %138 = vector.broadcast %137 : vector<8x1xf32> to vector<8x8xf32>
    %139 = arith.mulf %134, %138 : vector<8x8xf32>
    %140 = arith.truncf %139 : vector<8x8xf32> to vector<8x8xbf16>
    "tpu.trace_start"() <{level = 10 : i32, message = "qk,ke->qe"}> : () -> ()
    %cst_37 = arith.constant dense<0.000000e+00> : vector<8x8xf32>
    %141 = tpu.matmul %140, %126, %cst_37 {dimension_numbers = #tpu.dot_dimension_numbers<[1], [0], [0], [1], [0, 0, 1, 1], [], []>} : vector<8x8xbf16>, vector<8x8xbf16>, vector<8x8xf32> -> vector<8x8xf32>
    "tpu.trace_stop"() : () -> ()
    %142 = vector.extract_strided_slice %34 {offsets = [0, 40], sizes = [8, 8], strides = [1, 1]} : vector<8x64xf32> to vector<8x8xf32>
    %143 = arith.truncf %142 : vector<8x8xf32> to vector<8x8xbf16>
    %144 = vector.extract_strided_slice %35 {offsets = [0, 40], sizes = [8, 8], strides = [1, 1]} : vector<8x64xf32> to vector<8x8xf32>
    %145 = arith.truncf %144 : vector<8x8xf32> to vector<8x8xbf16>
    %146 = vector.extract_strided_slice %36 {offsets = [0, 40], sizes = [8, 8], strides = [1, 1]} : vector<8x64xf32> to vector<8x8xf32>
    %147 = arith.truncf %146 : vector<8x8xf32> to vector<8x8xbf16>
    "tpu.trace_start"() <{level = 10 : i32, message = "qe,ke->qk"}> : () -> ()
    %cst_38 = arith.constant dense<0.000000e+00> : vector<8x8xf32>
    %148 = tpu.matmul %143, %145, %cst_38 {dimension_numbers = #tpu.dot_dimension_numbers<[1], [1], [0], [0], [0, 0, 1, 0], [], []>} : vector<8x8xbf16>, vector<8x8xbf16>, vector<8x8xf32> -> vector<8x8xf32>
    "tpu.trace_stop"() : () -> ()
    %149 = vector.broadcast %3 : vector<1x8xf32> to vector<8x8xf32>
    %150 = arith.addf %148, %149 : vector<8x8xf32>
    %cst_39 = arith.constant dense<0xFF800000> : vector<8xf32>
    %151 = vector.multi_reduction <maximumf>, %150, %cst_39 [1] : vector<8x8xf32> to vector<8xf32>
    %152 = vector.shape_cast %151 : vector<8xf32> to vector<8x1xf32>
    %153 = vector.broadcast %152 : vector<8x1xf32> to vector<8x8xf32>
    %154 = arith.subf %150, %153 : vector<8x8xf32>
    %155 = math.exp %154 : vector<8x8xf32>
    %cst_40 = arith.constant dense<0.000000e+00> : vector<8xf32>
    %156 = vector.multi_reduction <add>, %155, %cst_40 [1] : vector<8x8xf32> to vector<8xf32>
    %157 = vector.shape_cast %156 : vector<8xf32> to vector<8x1xf32>
    %158 = tpu.reciprocal %157 {approx = true} : vector<8x1xf32> -> vector<8x1xf32>
    %159 = vector.broadcast %158 : vector<8x1xf32> to vector<8x8xf32>
    %160 = arith.mulf %155, %159 : vector<8x8xf32>
    %161 = arith.truncf %160 : vector<8x8xf32> to vector<8x8xbf16>
    "tpu.trace_start"() <{level = 10 : i32, message = "qk,ke->qe"}> : () -> ()
    %cst_41 = arith.constant dense<0.000000e+00> : vector<8x8xf32>
    %162 = tpu.matmul %161, %147, %cst_41 {dimension_numbers = #tpu.dot_dimension_numbers<[1], [0], [0], [1], [0, 0, 1, 1], [], []>} : vector<8x8xbf16>, vector<8x8xbf16>, vector<8x8xf32> -> vector<8x8xf32>
    "tpu.trace_stop"() : () -> ()
    %163 = vector.extract_strided_slice %34 {offsets = [0, 48], sizes = [8, 8], strides = [1, 1]} : vector<8x64xf32> to vector<8x8xf32>
    %164 = arith.truncf %163 : vector<8x8xf32> to vector<8x8xbf16>
    %165 = vector.extract_strided_slice %35 {offsets = [0, 48], sizes = [8, 8], strides = [1, 1]} : vector<8x64xf32> to vector<8x8xf32>
    %166 = arith.truncf %165 : vector<8x8xf32> to vector<8x8xbf16>
    %167 = vector.extract_strided_slice %36 {offsets = [0, 48], sizes = [8, 8], strides = [1, 1]} : vector<8x64xf32> to vector<8x8xf32>
    %168 = arith.truncf %167 : vector<8x8xf32> to vector<8x8xbf16>
    "tpu.trace_start"() <{level = 10 : i32, message = "qe,ke->qk"}> : () -> ()
    %cst_42 = arith.constant dense<0.000000e+00> : vector<8x8xf32>
    %169 = tpu.matmul %164, %166, %cst_42 {dimension_numbers = #tpu.dot_dimension_numbers<[1], [1], [0], [0], [0, 0, 1, 0], [], []>} : vector<8x8xbf16>, vector<8x8xbf16>, vector<8x8xf32> -> vector<8x8xf32>
    "tpu.trace_stop"() : () -> ()
    %170 = vector.broadcast %3 : vector<1x8xf32> to vector<8x8xf32>
    %171 = arith.addf %169, %170 : vector<8x8xf32>
    %cst_43 = arith.constant dense<0xFF800000> : vector<8xf32>
    %172 = vector.multi_reduction <maximumf>, %171, %cst_43 [1] : vector<8x8xf32> to vector<8xf32>
    %173 = vector.shape_cast %172 : vector<8xf32> to vector<8x1xf32>
    %174 = vector.broadcast %173 : vector<8x1xf32> to vector<8x8xf32>
    %175 = arith.subf %171, %174 : vector<8x8xf32>
    %176 = math.exp %175 : vector<8x8xf32>
    %cst_44 = arith.constant dense<0.000000e+00> : vector<8xf32>
    %177 = vector.multi_reduction <add>, %176, %cst_44 [1] : vector<8x8xf32> to vector<8xf32>
    %178 = vector.shape_cast %177 : vector<8xf32> to vector<8x1xf32>
    %179 = tpu.reciprocal %178 {approx = true} : vector<8x1xf32> -> vector<8x1xf32>
    %180 = vector.broadcast %179 : vector<8x1xf32> to vector<8x8xf32>
    %181 = arith.mulf %176, %180 : vector<8x8xf32>
    %182 = arith.truncf %181 : vector<8x8xf32> to vector<8x8xbf16>
    "tpu.trace_start"() <{level = 10 : i32, message = "qk,ke->qe"}> : () -> ()
    %cst_45 = arith.constant dense<0.000000e+00> : vector<8x8xf32>
    %183 = tpu.matmul %182, %168, %cst_45 {dimension_numbers = #tpu.dot_dimension_numbers<[1], [0], [0], [1], [0, 0, 1, 1], [], []>} : vector<8x8xbf16>, vector<8x8xbf16>, vector<8x8xf32> -> vector<8x8xf32>
    "tpu.trace_stop"() : () -> ()
    %184 = vector.extract_strided_slice %34 {offsets = [0, 56], sizes = [8, 8], strides = [1, 1]} : vector<8x64xf32> to vector<8x8xf32>
    %185 = arith.truncf %184 : vector<8x8xf32> to vector<8x8xbf16>
    %186 = vector.extract_strided_slice %35 {offsets = [0, 56], sizes = [8, 8], strides = [1, 1]} : vector<8x64xf32> to vector<8x8xf32>
    %187 = arith.truncf %186 : vector<8x8xf32> to vector<8x8xbf16>
    %188 = vector.extract_strided_slice %36 {offsets = [0, 56], sizes = [8, 8], strides = [1, 1]} : vector<8x64xf32> to vector<8x8xf32>
    %189 = arith.truncf %188 : vector<8x8xf32> to vector<8x8xbf16>
    "tpu.trace_start"() <{level = 10 : i32, message = "qe,ke->qk"}> : () -> ()
    %cst_46 = arith.constant dense<0.000000e+00> : vector<8x8xf32>
    %190 = tpu.matmul %185, %187, %cst_46 {dimension_numbers = #tpu.dot_dimension_numbers<[1], [1], [0], [0], [0, 0, 1, 0], [], []>} : vector<8x8xbf16>, vector<8x8xbf16>, vector<8x8xf32> -> vector<8x8xf32>
    "tpu.trace_stop"() : () -> ()
    %191 = vector.broadcast %3 : vector<1x8xf32> to vector<8x8xf32>
    %192 = arith.addf %190, %191 : vector<8x8xf32>
    %cst_47 = arith.constant dense<0xFF800000> : vector<8xf32>
    %193 = vector.multi_reduction <maximumf>, %192, %cst_47 [1] : vector<8x8xf32> to vector<8xf32>
    %194 = vector.shape_cast %193 : vector<8xf32> to vector<8x1xf32>
    %195 = vector.broadcast %194 : vector<8x1xf32> to vector<8x8xf32>
    %196 = arith.subf %192, %195 : vector<8x8xf32>
    %197 = math.exp %196 : vector<8x8xf32>
    %cst_48 = arith.constant dense<0.000000e+00> : vector<8xf32>
    %198 = vector.multi_reduction <add>, %197, %cst_48 [1] : vector<8x8xf32> to vector<8xf32>
    %199 = vector.shape_cast %198 : vector<8xf32> to vector<8x1xf32>
    %200 = tpu.reciprocal %199 {approx = true} : vector<8x1xf32> -> vector<8x1xf32>
    %201 = vector.broadcast %200 : vector<8x1xf32> to vector<8x8xf32>
    %202 = arith.mulf %197, %201 : vector<8x8xf32>
    %203 = arith.truncf %202 : vector<8x8xf32> to vector<8x8xbf16>
    "tpu.trace_start"() <{level = 10 : i32, message = "qk,ke->qe"}> : () -> ()
    %cst_49 = arith.constant dense<0.000000e+00> : vector<8x8xf32>
    %204 = tpu.matmul %203, %189, %cst_49 {dimension_numbers = #tpu.dot_dimension_numbers<[1], [0], [0], [1], [0, 0, 1, 1], [], []>} : vector<8x8xbf16>, vector<8x8xbf16>, vector<8x8xf32> -> vector<8x8xf32>
    "tpu.trace_stop"() : () -> ()
    %205 = tpu.concatenate %57, %78, %99, %120, %141, %162, %183, %204 in 1 : vector<8x8xf32>, vector<8x8xf32>, vector<8x8xf32>, vector<8x8xf32>, vector<8x8xf32>, vector<8x8xf32>, vector<8x8xf32>, vector<8x8xf32> -> vector<8x64xf32>
    %206 = arith.truncf %205 : vector<8x64xf32> to vector<8x64xbf16>
    %c0_50 = arith.constant 0 : index
    %c0_51 = arith.constant 0 : index
    %207 = vector.load %arg7[%c0_50, %c0_51] : memref<64x64xbf16, #tpu.memory_space<vmem>>, vector<64x64xbf16>
    %cst_52 = arith.constant dense<0.000000e+00> : vector<8x64xf32>
    %208 = tpu.matmul %206, %207, %cst_52 {dimension_numbers = #tpu.dot_dimension_numbers<[1], [0], [0], [1], [0, 0, 1, 1], [], []>} : vector<8x64xbf16>, vector<64x64xbf16>, vector<8x64xf32> -> vector<8x64xf32>
    %c0_53 = arith.constant 0 : index
    %c0_54 = arith.constant 0 : index
    %209 = vector.load %arg8[%c0_53, %c0_54] : memref<1x64xf32, #tpu.memory_space<vmem>>, vector<1x64xf32>
    %210 = vector.broadcast %209 : vector<1x64xf32> to vector<8x64xf32>
    %211 = arith.addf %208, %210 : vector<8x64xf32>
    %212 = arith.addf %211, %1 : vector<8x64xf32>
    %c0_55 = arith.constant 0 : index
    %c0_56 = arith.constant 0 : index
    %213 = vector.load %arg9[%c0_55, %c0_56] : memref<1x64xf32, #tpu.memory_space<vmem>>, vector<1x64xf32>
    %c0_57 = arith.constant 0 : index
    %c0_58 = arith.constant 0 : index
    %214 = vector.load %arg10[%c0_57, %c0_58] : memref<1x64xf32, #tpu.memory_space<vmem>>, vector<1x64xf32>
    %cst_59 = arith.constant dense<0.000000e+00> : vector<8xf32>
    %215 = vector.multi_reduction <add>, %212, %cst_59 [1] : vector<8x64xf32> to vector<8xf32>
    %216 = vector.shape_cast %215 : vector<8xf32> to vector<8x1xf32>
    %cst_60 = arith.constant 6.400000e+01 : f32
    %217 = vector.broadcast %cst_60 : f32 to vector<8x1xf32>
    %218 = arith.divf %216, %217 : vector<8x1xf32>
    %219 = vector.broadcast %218 : vector<8x1xf32> to vector<8x64xf32>
    %220 = arith.subf %212, %219 : vector<8x64xf32>
    %221 = arith.mulf %220, %220 : vector<8x64xf32>
    %cst_61 = arith.constant dense<0.000000e+00> : vector<8xf32>
    %222 = vector.multi_reduction <add>, %221, %cst_61 [1] : vector<8x64xf32> to vector<8xf32>
    %223 = vector.shape_cast %222 : vector<8xf32> to vector<8x1xf32>
    %cst_62 = arith.constant 0.0158730168 : f32
    %224 = vector.broadcast %cst_62 : f32 to vector<8x1xf32>
    %225 = arith.mulf %223, %224 : vector<8x1xf32>
    %226 = vector.broadcast %218 : vector<8x1xf32> to vector<8x64xf32>
    %227 = arith.subf %212, %226 : vector<8x64xf32>
    %228 = math.sqrt %225 : vector<8x1xf32>
    %cst_63 = arith.constant 9.99999997E-7 : f32
    %229 = vector.broadcast %cst_63 : f32 to vector<8x1xf32>
    %230 = arith.addf %228, %229 : vector<8x1xf32>
    %231 = vector.broadcast %230 : vector<8x1xf32> to vector<8x64xf32>
    %232 = arith.divf %227, %231 : vector<8x64xf32>
    %233 = vector.broadcast %213 : vector<1x64xf32> to vector<8x64xf32>
    %234 = arith.mulf %232, %233 : vector<8x64xf32>
    %235 = vector.broadcast %214 : vector<1x64xf32> to vector<8x64xf32>
    %236 = arith.addf %234, %235 : vector<8x64xf32>
    %237 = arith.truncf %236 : vector<8x64xf32> to vector<8x64xbf16>
    %c0_64 = arith.constant 0 : index
    %c0_65 = arith.constant 0 : index
    %238 = vector.load %arg11[%c0_64, %c0_65] : memref<64x128xbf16, #tpu.memory_space<vmem>>, vector<64x128xbf16>
    %cst_66 = arith.constant dense<0.000000e+00> : vector<8x128xf32>
    %239 = tpu.matmul %237, %238, %cst_66 {dimension_numbers = #tpu.dot_dimension_numbers<[1], [0], [0], [1], [0, 0, 1, 1], [], []>} : vector<8x64xbf16>, vector<64x128xbf16>, vector<8x128xf32> -> vector<8x128xf32>
    %c0_67 = arith.constant 0 : index
    %c0_68 = arith.constant 0 : index
    %240 = vector.load %arg12[%c0_67, %c0_68] : memref<1x128xf32, #tpu.memory_space<vmem>>, vector<1x128xf32>
    %241 = vector.broadcast %240 : vector<1x128xf32> to vector<8x128xf32>
    %242 = arith.addf %239, %241 : vector<8x128xf32>
    %cst_69 = arith.constant 0.000000e+00 : f32
    %243 = vector.broadcast %cst_69 : f32 to vector<8x128xf32>
    %244 = arith.maximumf %242, %243 : vector<8x128xf32>
    %245 = arith.truncf %244 : vector<8x128xf32> to vector<8x128xbf16>
    %c0_70 = arith.constant 0 : index
    %c0_71 = arith.constant 0 : index
    %246 = vector.load %arg13[%c0_70, %c0_71] : memref<128x64xbf16, #tpu.memory_space<vmem>>, vector<128x64xbf16>
    %cst_72 = arith.constant dense<0.000000e+00> : vector<8x64xf32>
    %247 = tpu.matmul %245, %246, %cst_72 {dimension_numbers = #tpu.dot_dimension_numbers<[1], [0], [0], [1], [0, 0, 1, 1], [], []>} : vector<8x128xbf16>, vector<128x64xbf16>, vector<8x64xf32> -> vector<8x64xf32>
    %c0_73 = arith.constant 0 : index
    %c0_74 = arith.constant 0 : index
    %248 = vector.load %arg14[%c0_73, %c0_74] : memref<1x64xf32, #tpu.memory_space<vmem>>, vector<1x64xf32>
    %249 = vector.broadcast %248 : vector<1x64xf32> to vector<8x64xf32>
    %250 = arith.addf %247, %249 : vector<8x64xf32>
    %251 = arith.addf %250, %212 : vector<8x64xf32>
    %c0_75 = arith.constant 0 : index
    %c0_76 = arith.constant 0 : index
    %c0_77 = arith.constant 0 : index
    %252 = vector.load %arg15[%c0_75, %c0_76, %c0_77] : memref<1x8x64xf32, #tpu.memory_space<vmem>>, vector<1x8x64xf32>
    %253 = vector.shape_cast %252 : vector<1x8x64xf32> to vector<8x64xf32>
    %254 = vector.shape_cast %251 : vector<8x64xf32> to vector<1x8x64xf32>
    tpu.vector_store %arg15[%c0_75, %c0_76, %c0_77], %254 {strides = array<i32>} : memref<1x8x64xf32, #tpu.memory_space<vmem>>, vector<1x8x64xf32>,
    return
  }
  func.func @transform_0(%arg0: i32) -> (i32, i32, i32) {
    %c0_i32 = arith.constant 0 : i32
    %c0_i32_0 = arith.constant 0 : i32
    %c0_i32_1 = arith.constant 0 : i32
    return %arg0, %c0_i32, %c0_i32_0 : i32, i32, i32
  }
  func.func @transform_1(%arg0: i32) -> (i32, i32, i32) {
    %c0_i32 = arith.constant 0 : i32
    %c0_i32_0 = arith.constant 0 : i32
    %c0_i32_1 = arith.constant 0 : i32
    return %arg0, %c0_i32, %c0_i32_0 : i32, i32, i32
  }
  func.func @transform_2(%arg0: i32) -> (i32, i32) {
    %c0_i32 = arith.constant 0 : i32
    %c0_i32_0 = arith.constant 0 : i32
    %c0_i32_1 = arith.constant 0 : i32
    return %c0_i32, %c0_i32_0 : i32, i32
  }
  func.func @transform_3(%arg0: i32) -> (i32, i32) {
    %c0_i32 = arith.constant 0 : i32
    %c0_i32_0 = arith.constant 0 : i32
    %c0_i32_1 = arith.constant 0 : i32
    return %c0_i32, %c0_i32_0 : i32, i32
  }
  func.func @transform_4(%arg0: i32) -> (i32, i32) {
    %c0_i32 = arith.constant 0 : i32
    %c0_i32_0 = arith.constant 0 : i32
    %c0_i32_1 = arith.constant 0 : i32
    return %c0_i32, %c0_i32_0 : i32, i32
  }
  func.func @transform_5(%arg0: i32) -> (i32, i32) {
    %c0_i32 = arith.constant 0 : i32
    %c0_i32_0 = arith.constant 0 : i32
    %c0_i32_1 = arith.constant 0 : i32
    return %c0_i32, %c0_i32_0 : i32, i32
  }
  func.func @transform_6(%arg0: i32) -> (i32, i32) {
    %c0_i32 = arith.constant 0 : i32
    %c0_i32_0 = arith.constant 0 : i32
    %c0_i32_1 = arith.constant 0 : i32
    return %c0_i32, %c0_i32_0 : i32, i32
  }
  func.func @transform_7(%arg0: i32) -> (i32, i32) {
    %c0_i32 = arith.constant 0 : i32
    %c0_i32_0 = arith.constant 0 : i32
    %c0_i32_1 = arith.constant 0 : i32
    return %c0_i32, %c0_i32_0 : i32, i32
  }
  func.func @transform_8(%arg0: i32) -> (i32, i32) {
    %c0_i32 = arith.constant 0 : i32
    %c0_i32_0 = arith.constant 0 : i32
    %c0_i32_1 = arith.constant 0 : i32
    return %c0_i32, %c0_i32_0 : i32, i32
  }
  func.func @transform_9(%arg0: i32) -> (i32, i32) {
    %c0_i32 = arith.constant 0 : i32
    %c0_i32_0 = arith.constant 0 : i32
    %c0_i32_1 = arith.constant 0 : i32
    return %c0_i32, %c0_i32_0 : i32, i32
  }
  func.func @transform_10(%arg0: i32) -> (i32, i32) {
    %c0_i32 = arith.constant 0 : i32
    %c0_i32_0 = arith.constant 0 : i32
    %c0_i32_1 = arith.constant 0 : i32
    return %c0_i32, %c0_i32_0 : i32, i32
  }
  func.func @transform_11(%arg0: i32) -> (i32, i32) {
    %c0_i32 = arith.constant 0 : i32
    %c0_i32_0 = arith.constant 0 : i32
    %c0_i32_1 = arith.constant 0 : i32
    return %c0_i32, %c0_i32_0 : i32, i32
  }
  func.func @transform_12(%arg0: i32) -> (i32, i32) {
    %c0_i32 = arith.constant 0 : i32
    %c0_i32_0 = arith.constant 0 : i32
    %c0_i32_1 = arith.constant 0 : i32
    return %c0_i32, %c0_i32_0 : i32, i32
  }
  func.func @transform_13(%arg0: i32) -> (i32, i32) {
    %c0_i32 = arith.constant 0 : i32
    %c0_i32_0 = arith.constant 0 : i32
    %c0_i32_1 = arith.constant 0 : i32
    return %c0_i32, %c0_i32_0 : i32, i32
  }
  func.func @transform_14(%arg0: i32) -> (i32, i32, i32) {
    %c0_i32 = arith.constant 0 : i32
    %c0_i32_0 = arith.constant 0 : i32
    %c0_i32_1 = arith.constant 0 : i32
    return %arg0, %c0_i32, %c0_i32_0 : i32, i32, i32
  }
}

</mosaic_0001>

<llo_original>
// kernel: tpu_custom_call.1
$region0: #{tpu_custom_call.1}
  #allocation0 [shape = 'u32[]', space=smem, size = 0x4, offset = 0x4, fixed_abs, tag = 'smem constant byte address 0x4 - core index']
  #allocation1 [shape = 'u32[72,128]{1,0:T(1,128)}', space=vmem, size = 0x9000, scoped, tag = 'internal scratch']
  %s0 = inlined_call_operand.hbm [shape: f32[2,8,64], index: 0, kind: input, shape index: {}]
  %s1 = inlined_call_operand.vmem [shape: f32[2,1,8], index: 1, kind: input, shape index: {}]
  %s2 = inlined_call_operand.vmem [shape: f32[1,64], index: 2, kind: input, shape index: {}]
  %s3 = inlined_call_operand.hbm [shape: f32[1,64], index: 3, kind: input, shape index: {}]
  %s4 = inlined_call_operand.vmem [shape: bf16[64,192], index: 4, kind: input, shape index: {}]
  %s5 = inlined_call_operand.hbm [shape: f32[1,192], index: 5, kind: input, shape index: {}]
  %s6 = inlined_call_operand.vmem [shape: bf16[64,64], index: 6, kind: input, shape index: {}]
  %s7 = inlined_call_operand.vmem [shape: f32[1,64], index: 7, kind: input, shape index: {}]
  %s8 = inlined_call_operand.vmem [shape: f32[1,64], index: 8, kind: input, shape index: {}]
  %s9 = inlined_call_operand.vmem [shape: f32[1,64], index: 9, kind: input, shape index: {}]
  %s10 = inlined_call_operand.hbm [shape: bf16[64,128], index: 10, kind: input, shape index: {}]
  %s11 = inlined_call_operand.vmem [shape: f32[1,128], index: 11, kind: input, shape index: {}]
  %s12 = inlined_call_operand.vmem [shape: bf16[128,64], index: 12, kind: input, shape index: {}]
  %s13 = inlined_call_operand.vmem [shape: f32[1,64], index: 13, kind: input, shape index: {}]
  %s14 = inlined_call_operand.hbm [shape: f32[2,8,64], index: 14, kind: output, shape index: {}]
  %s15 = sld [smem:[#allocation0]]
  $region105: #{tpu_custom_call.1} parent=0
    _
  %s17 = ssub.s32 1, %s15
  %s18 = scalar_select 0, %s17, %s15
  $region1: #{tpu_custom_call.1} parent=0
    #allocation2 [shape = 'u8[8192]{0}', space=vmem, size = 0x2000, scoped, tag = 'input window, operand 0']
    #allocation3 [shape = 's32[2]{0}', space=sflag, size = 0x8, scoped, tag = 'scoped memory for tpu_custom_call.1']
    #allocation4 [shape = 's32[2]{0}', space=sflag, size = 0x8, scoped, tag = 'scoped memory for tpu_custom_call.1']
    #allocation5 [shape = 'u8[512]{0}', space=vmem, size = 0x400, scoped, tag = 'input window, operand 3, single buffered']
    #allocation6 [shape = 's32[1]{0}', space=sflag, size = 0x4, scoped, tag = 'scoped memory for tpu_custom_call.1']
    #allocation7 [shape = 'u8[1024]{0}', space=vmem, size = 0x400, scoped, tag = 'input window, operand 5, single buffered']
    #allocation8 [shape = 'u8[16384]{0}', space=vmem, size = 0x4000, scoped, tag = 'input window, operand 10, single buffered']
    #allocation9 [shape = 's32[1]{0}', space=sflag, size = 0x4, scoped, tag = 'scoped memory for tpu_custom_call.1']
    #allocation10 [shape = 'u8[8192]{0}', space=vmem, size = 0x2000, scoped, tag = 'output window, operand 0']
    %19 = vsyncpa [#allocation3], 0
    %s20 = scalar_lea.sflag [#allocation3], 1
    %21 = vsyncpa %s20, 0
    %22 = vsyncpa [#allocation6], 0
    %23 = vsyncpa [#allocation9], 0
    %24 = vsyncpa [#allocation4], 0
    %s25 = scalar_lea.sflag [#allocation4], 1
    %26 = vsyncpa %s25, 0
    loop: start=0, step=1, limit=4
    $region2: #{tpu_custom_call.1} parent=1 // loop_pre_header
      _
    $region3: #{tpu_custom_call.1} parent=1 // loop_header
      %s28 = sphi 0, %s32
      %p29 = scmp.ge.s32.totalorder %s28, 4
      %s38 = sphi 0, %s40
      %s41 = sphi 0, %s38
      %s42 = sphi 0, %s41
      %s58 = sphi 0, %s42
      %s64 = sphi 0, %s66
      %s67 = sphi 0, %s64
      %s68 = sphi 0, %s67
      %s84 = sphi 0, %s68
      %s88 = sphi 0, %s88
      %s90 = sphi 0, %s88
      %s91 = sphi 0, %s90
      %s105 = sphi 0, %s91
      %s109 = sphi 0, %s109
      %s111 = sphi 0, %s109
      %s112 = sphi 0, %s111
      %s126 = sphi 0, %s112
      %s130 = sphi 0, %s130
      %s132 = sphi 0, %s130
      %s133 = sphi 0, %s132
      %s147 = sphi 0, %s133
      %s151 = sphi 0, %s151
      %s153 = sphi 0, %s151
      %s154 = sphi 0, %s153
      %s168 = sphi 0, %s154
      %s172 = sphi 0, %s172
      %s174 = sphi 0, %s172
      %s175 = sphi 0, %s174
      %s189 = sphi 0, %s175
      %s193 = sphi 0, %s193
      %s195 = sphi 0, %s193
      %s196 = sphi 0, %s195
      %s210 = sphi 0, %s196
      %s214 = sphi 0, %s214
      %s216 = sphi 0, %s214
      %s217 = sphi 0, %s216
      %s231 = sphi 0, %s217
      %s235 = sphi 0, %s235
      %s237 = sphi 0, %s235
      %s238 = sphi 0, %s237
      %s252 = sphi 0, %s238
      %s256 = sphi 0, %s256
      %s258 = sphi 0, %s256
      %s259 = sphi 0, %s258
      %s273 = sphi 0, %s259
      %s277 = sphi 0, %s277
      %s279 = sphi 0, %s277
      %s280 = sphi 0, %s279
      %s294 = sphi 0, %s280
      %s298 = sphi 0, %s298
      %s300 = sphi 0, %s298
      %s301 = sphi 0, %s300
      %s315 = sphi 0, %s301
      %s319 = sphi 0, %s319
      %s321 = sphi 0, %s319
      %s322 = sphi 0, %s321
      %s336 = sphi 0, %s322
      %s342 = sphi 0, %s344
      %s345 = sphi 0, %s342
      %s346 = sphi 0, %s345
      %s362 = sphi 0, %s346
    $region4: #{tpu_custom_call.1} parent=1 // loop_header_branch
      %31 = sbr.rel (%p29) target = $region8
    $region5: #{tpu_custom_call.1} parent=1 // loop_body
      %s33 = ssub.s32 %s28, 1
      %s34 = ssub.s32 %s28, 2
      %s35 = sadd.s32 %s28, 1
      %s36 = ssub.s32 %s28, %s35
      %p37 = scmp.eq.s32.totalorder %s36, 0
      %s39 = sadd.s32 %s38, 1
      %s40 = scalar_select %p37, %s38, %s39
      %p43 = pneg %p37
      %p44 = scmp.eq.s32.totalorder %s28, 1
      %p45 = por %p43, %p44
      %p46 = scmp.ne.s32.totalorder %s38, %s41
      %p47 = scmp.eq.s32.totalorder %s28, 0
      %p48 = por %p46, %p47
      %p49 = scmp.ne.s32.totalorder %s38, %s41
      %p50 = scmp.eq.s32.totalorder %s33, 1
      %p51 = por %p49, %p50
      %p52 = scmp.ne.s32.totalorder %s41, %s42
      %p53 = scmp.eq.s32.totalorder %s33, 0
      %p54 = por %p52, %p53
      %p55 = scmp.ne.s32.totalorder %s41, %s42
      %p56 = scmp.eq.s32.totalorder %s34, 1
      %p57 = por %p55, %p56
      %p59 = scmp.ne.s32.totalorder %s42, %s58
      %p60 = scmp.eq.s32.totalorder %s34, 0
      %p61 = por %p59, %p60
      %s62 = ssub.s32 %s28, %s35
      %p63 = scmp.eq.s32.totalorder %s62, 0
      %s65 = sadd.s32 %s64, 1
      %s66 = scalar_select %p63, %s64, %s65
      %p69 = pneg %p63
      %p70 = scmp.eq.s32.totalorder %s28, 1
      %p71 = por %p69, %p70
      %p72 = scmp.ne.s32.totalorder %s64, %s67
      %p73 = scmp.eq.s32.totalorder %s28, 0
      %p74 = por %p72, %p73
      %p75 = scmp.ne.s32.totalorder %s64, %s67
      %p76 = scmp.eq.s32.totalorder %s33, 1
      %p77 = por %p75, %p76
      %p78 = scmp.ne.s32.totalorder %s67, %s68
      %p79 = scmp.eq.s32.totalorder %s33, 0
      %p80 = por %p78, %p79
      %p81 = scmp.ne.s32.totalorder %s67, %s68
      %p82 = scmp.eq.s32.totalorder %s34, 1
      %p83 = por %p81, %p82
      %p85 = scmp.ne.s32.totalorder %s68, %s84
      %p86 = scmp.eq.s32.totalorder %s34, 0
      %p87 = por %p85, %p86
      %s89 = sadd.s32 %s88, 1
      %p92 = scmp.eq.s32.totalorder %s28, 1
      %p93 = scmp.ne.s32.totalorder %s88, %s90
      %p94 = scmp.eq.s32.totalorder %s28, 0
      %p95 = por %p93, %p94
      %p96 = scmp.ne.s32.totalorder %s88, %s90
      %p97 = scmp.eq.s32.totalorder %s33, 1
      %p98 = por %p96, %p97
      %p99 = scmp.ne.s32.totalorder %s90, %s91
      %p100 = scmp.eq.s32.totalorder %s33, 0
      %p101 = por %p99, %p100
      %p102 = scmp.ne.s32.totalorder %s90, %s91
      %p103 = scmp.eq.s32.totalorder %s34, 1
      %p104 = por %p102, %p103
      %p106 = scmp.ne.s32.totalorder %s91, %s105
      %p107 = scmp.eq.s32.totalorder %s34, 0
      %p108 = por %p106, %p107
      %s110 = sadd.s32 %s109, 1
      %p113 = scmp.eq.s32.totalorder %s28, 1
      %p114 = scmp.ne.s32.totalorder %s109, %s111
      %p115 = scmp.eq.s32.totalorder %s28, 0
      %p116 = por %p114, %p115
      %p117 = scmp.ne.s32.totalorder %s109, %s111
      %p118 = scmp.eq.s32.totalorder %s33, 1
      %p119 = por %p117, %p118
      %p120 = scmp.ne.s32.totalorder %s111, %s112
      %p121 = scmp.eq.s32.totalorder %s33, 0
      %p122 = por %p120, %p121
      %p123 = scmp.ne.s32.totalorder %s111, %s112
      %p124 = scmp.eq.s32.totalorder %s34, 1
      %p125 = por %p123, %p124
      %p127 = scmp.ne.s32.totalorder %s112, %s126
      %p128 = scmp.eq.s32.totalorder %s34, 0
      %p129 = por %p127, %p128
      %s131 = sadd.s32 %s130, 1
      %p134 = scmp.eq.s32.totalorder %s28, 1
      %p135 = scmp.ne.s32.totalorder %s130, %s132
      %p136 = scmp.eq.s32.totalorder %s28, 0
      %p137 = por %p135, %p136
      %p138 = scmp.ne.s32.totalorder %s130, %s132
      %p139 = scmp.eq.s32.totalorder %s33, 1
      %p140 = por %p138, %p139
      %p141 = scmp.ne.s32.totalorder %s132, %s133
      %p142 = scmp.eq.s32.totalorder %s33, 0
      %p143 = por %p141, %p142
      %p144 = scmp.ne.s32.totalorder %s132, %s133
      %p145 = scmp.eq.s32.totalorder %s34, 1
      %p146 = por %p144, %p145
      %p148 = scmp.ne.s32.totalorder %s133, %s147
      %p149 = scmp.eq.s32.totalorder %s34, 0
      %p150 = por %p148, %p149
      %s152 = sadd.s32 %s151, 1
      %p155 = scmp.eq.s32.totalorder %s28, 1
      %p156 = scmp.ne.s32.totalorder %s151, %s153
      %p157 = scmp.eq.s32.totalorder %s28, 0
      %p158 = por %p156, %p157
      %p159 = scmp.ne.s32.totalorder %s151, %s153
      %p160 = scmp.eq.s32.totalorder %s33, 1
      %p161 = por %p159, %p160
      %p162 = scmp.ne.s32.totalorder %s153, %s154
      %p163 = scmp.eq.s32.totalorder %s33, 0
      %p164 = por %p162, %p163
      %p165 = scmp.ne.s32.totalorder %s153, %s154
      %p166 = scmp.eq.s32.totalorder %s34, 1
      %p167 = por %p165, %p166
      %p169 = scmp.ne.s32.totalorder %s154, %s168
      %p170 = scmp.eq.s32.totalorder %s34, 0
      %p171 = por %p169, %p170
      %s173 = sadd.s32 %s172, 1
      %p176 = scmp.eq.s32.totalorder %s28, 1
      %p177 = scmp.ne.s32.totalorder %s172, %s174
      %p178 = scmp.eq.s32.totalorder %s28, 0
      %p179 = por %p177, %p178
      %p180 = scmp.ne.s32.totalorder %s172, %s174
      %p181 = scmp.eq.s32.totalorder %s33, 1
      %p182 = por %p180, %p181
      %p183 = scmp.ne.s32.totalorder %s174, %s175
      %p184 = scmp.eq.s32.totalorder %s33, 0
      %p185 = por %p183, %p184
      %p186 = scmp.ne.s32.totalorder %s174, %s175
      %p187 = scmp.eq.s32.totalorder %s34, 1
      %p188 = por %p186, %p187
      %p190 = scmp.ne.s32.totalorder %s175, %s189
      %p191 = scmp.eq.s32.totalorder %s34, 0
      %p192 = por %p190, %p191
      %s194 = sadd.s32 %s193, 1
      %p197 = scmp.eq.s32.totalorder %s28, 1
      %p198 = scmp.ne.s32.totalorder %s193, %s195
      %p199 = scmp.eq.s32.totalorder %s28, 0
      %p200 = por %p198, %p199
      %p201 = scmp.ne.s32.totalorder %s193, %s195
      %p202 = scmp.eq.s32.totalorder %s33, 1
      %p203 = por %p201, %p202
      %p204 = scmp.ne.s32.totalorder %s195, %s196
      %p205 = scmp.eq.s32.totalorder %s33, 0
      %p206 = por %p204, %p205
      %p207 = scmp.ne.s32.totalorder %s195, %s196
      %p208 = scmp.eq.s32.totalorder %s34, 1
      %p209 = por %p207, %p208
      %p211 = scmp.ne.s32.totalorder %s196, %s210
      %p212 = scmp.eq.s32.totalorder %s34, 0
      %p213 = por %p211, %p212
      %s215 = sadd.s32 %s214, 1
      %p218 = scmp.eq.s32.totalorder %s28, 1
      %p219 = scmp.ne.s32.totalorder %s214, %s216
      %p220 = scmp.eq.s32.totalorder %s28, 0
      %p221 = por %p219, %p220
      %p222 = scmp.ne.s32.totalorder %s214, %s216
      %p223 = scmp.eq.s32.totalorder %s33, 1
      %p224 = por %p222, %p223
      %p225 = scmp.ne.s32.totalorder %s216, %s217
      %p226 = scmp.eq.s32.totalorder %s33, 0
      %p227 = por %p225, %p226
      %p228 = scmp.ne.s32.totalorder %s216, %s217
      %p229 = scmp.eq.s32.totalorder %s34, 1
      %p230 = por %p228, %p229
      %p232 = scmp.ne.s32.totalorder %s217, %s231
      %p233 = scmp.eq.s32.totalorder %s34, 0
      %p234 = por %p232, %p233
      %s236 = sadd.s32 %s235, 1
      %p239 = scmp.eq.s32.totalorder %s28, 1
      %p240 = scmp.ne.s32.totalorder %s235, %s237
      %p241 = scmp.eq.s32.totalorder %s28, 0
      %p242 = por %p240, %p241
      %p243 = scmp.ne.s32.totalorder %s235, %s237
      %p244 = scmp.eq.s32.totalorder %s33, 1
      %p245 = por %p243, %p244
      %p246 = scmp.ne.s32.totalorder %s237, %s238
      %p247 = scmp.eq.s32.totalorder %s33, 0
      %p248 = por %p246, %p247
      %p249 = scmp.ne.s32.totalorder %s237, %s238
      %p250 = scmp.eq.s32.totalorder %s34, 1
      %p251 = por %p249, %p250
      %p253 = scmp.ne.s32.totalorder %s238, %s252
      %p254 = scmp.eq.s32.totalorder %s34, 0
      %p255 = por %p253, %p254
      %s257 = sadd.s32 %s256, 1
      %p260 = scmp.eq.s32.totalorder %s28, 1
      %p261 = scmp.ne.s32.totalorder %s256, %s258
      %p262 = scmp.eq.s32.totalorder %s28, 0
      %p263 = por %p261, %p262
      %p264 = scmp.ne.s32.totalorder %s256, %s258
      %p265 = scmp.eq.s32.totalorder %s33, 1
      %p266 = por %p264, %p265
      %p267 = scmp.ne.s32.totalorder %s258, %s259
      %p268 = scmp.eq.s32.totalorder %s33, 0
      %p269 = por %p267, %p268
      %p270 = scmp.ne.s32.totalorder %s258, %s259
      %p271 = scmp.eq.s32.totalorder %s34, 1
      %p272 = por %p270, %p271
      %p274 = scmp.ne.s32.totalorder %s259, %s273
      %p275 = scmp.eq.s32.totalorder %s34, 0
      %p276 = por %p274, %p275
      %s278 = sadd.s32 %s277, 1
      %p281 = scmp.eq.s32.totalorder %s28, 1
      %p282 = scmp.ne.s32.totalorder %s277, %s279
      %p283 = scmp.eq.s32.totalorder %s28, 0
      %p284 = por %p282, %p283
      %p285 = scmp.ne.s32.totalorder %s277, %s279
      %p286 = scmp.eq.s32.totalorder %s33, 1
      %p287 = por %p285, %p286
      %p288 = scmp.ne.s32.totalorder %s279, %s280
      %p289 = scmp.eq.s32.totalorder %s33, 0
      %p290 = por %p288, %p289
      %p291 = scmp.ne.s32.totalorder %s279, %s280
      %p292 = scmp.eq.s32.totalorder %s34, 1
      %p293 = por %p291, %p292
      %p295 = scmp.ne.s32.totalorder %s280, %s294
      %p296 = scmp.eq.s32.totalorder %s34, 0
      %p297 = por %p295, %p296
      %s299 = sadd.s32 %s298, 1
      %p302 = scmp.eq.s32.totalorder %s28, 1
      %p303 = scmp.ne.s32.totalorder %s298, %s300
      %p304 = scmp.eq.s32.totalorder %s28, 0
      %p305 = por %p303, %p304
      %p306 = scmp.ne.s32.totalorder %s298, %s300
      %p307 = scmp.eq.s32.totalorder %s33, 1
      %p308 = por %p306, %p307
      %p309 = scmp.ne.s32.totalorder %s300, %s301
      %p310 = scmp.eq.s32.totalorder %s33, 0
      %p311 = por %p309, %p310
      %p312 = scmp.ne.s32.totalorder %s300, %s301
      %p313 = scmp.eq.s32.totalorder %s34, 1
      %p314 = por %p312, %p313
      %p316 = scmp.ne.s32.totalorder %s301, %s315
      %p317 = scmp.eq.s32.totalorder %s34, 0
      %p318 = por %p316, %p317
      %s320 = sadd.s32 %s319, 1
      %p323 = scmp.eq.s32.totalorder %s28, 1
      %p324 = scmp.ne.s32.totalorder %s319, %s321
      %p325 = scmp.eq.s32.totalorder %s28, 0
      %p326 = por %p324, %p325
      %p327 = scmp.ne.s32.totalorder %s319, %s321
      %p328 = scmp.eq.s32.totalorder %s33, 1
      %p329 = por %p327, %p328
      %p330 = scmp.ne.s32.totalorder %s321, %s322
      %p331 = scmp.eq.s32.totalorder %s33, 0
      %p332 = por %p330, %p331
      %p333 = scmp.ne.s32.totalorder %s321, %s322
      %p334 = scmp.eq.s32.totalorder %s34, 1
      %p335 = por %p333, %p334
      %p337 = scmp.ne.s32.totalorder %s322, %s336
      %p338 = scmp.eq.s32.totalorder %s34, 0
      %p339 = por %p337, %p338
      %s340 = ssub.s32 %s28, %s35
      %p341 = scmp.eq.s32.totalorder %s340, 0
      %s343 = sadd.s32 %s342, 1
      %s344 = scalar_select %p341, %s342, %s343
      %p347 = pneg %p341
      %p348 = scmp.eq.s32.totalorder %s28, 1
      %p349 = por %p347, %p348
      %p350 = scmp.ne.s32.totalorder %s342, %s345
      %p351 = scmp.eq.s32.totalorder %s28, 0
      %p352 = por %p350, %p351
      %p353 = scmp.ne.s32.totalorder %s342, %s345
      %p354 = scmp.eq.s32.totalorder %s33, 1
      %p355 = por %p353, %p354
      %p356 = scmp.ne.s32.totalorder %s345, %s346
      %p357 = scmp.eq.s32.totalorder %s33, 0
      %p358 = por %p356, %p357
      %p359 = scmp.ne.s32.totalorder %s345, %s346
      %p360 = scmp.eq.s32.totalorder %s34, 1
      %p361 = por %p359, %p360
      %p363 = scmp.ne.s32.totalorder %s346, %s362
      %p364 = scmp.eq.s32.totalorder %s34, 0
      %p365 = por %p363, %p364
      %p366 = scmp.le.s32.totalorder 1, %s28
      %p367 = scmp.lt.s32.totalorder %s28, 3
      %p368 = pnand %p366, %p367
      %p369 = pneg %p368
      // Predicated region
      $region9: #{tpu_custom_call.1} parent=5 // pred_check
        _
      $region10: #{tpu_custom_call.1} parent=5 // pred_check_branch
        %371 = sbr.rel (%p368) target = $region12
      $region11: #{tpu_custom_call.1} parent=5 // pred_region
        %s372 = ssub.s32 %s28, 1
        // Predicated region
        $region13: #{tpu_custom_call.1} parent=11 // pred_check
          %p373 = pneg %p101
        $region14: #{tpu_custom_call.1} parent=11 // pred_check_branch
          %375 = sbr.rel (%p373) target = $region16
        $region15: #{tpu_custom_call.1} parent=11 // pred_region
          _
        $region16: #{tpu_custom_call.1} parent=11 // pred_fallthru
          _
        // Predicated region
        $region17: #{tpu_custom_call.1} parent=11 // pred_check
          %p376 = pneg %p122
        $region18: #{tpu_custom_call.1} parent=11 // pred_check_branch
          %378 = sbr.rel (%p376) target = $region20
        $region19: #{tpu_custom_call.1} parent=11 // pred_region
          %380 = vsyncadd [#allocation6], 0
          %s382 = sshll.u32 %s3, 4
          %s383 = int_to_ptr.hbm [resolvable:$true] %s382
          %s384 = sshll.u32 [#allocation5], 4
          %s385 = int_to_ptr.vmem [resolvable:$true] %s384
          %387 = dma.hbm_to_vmem [thread:$0]  %s383, 16, %s385, [#allocation6]
        $region20: #{tpu_custom_call.1} parent=11 // pred_fallthru
          _
        // Predicated region
        $region21: #{tpu_custom_call.1} parent=11 // pred_check
          %p388 = pneg %p143
        $region22: #{tpu_custom_call.1} parent=11 // pred_check_branch
          %390 = sbr.rel (%p388) target = $region24
        $region23: #{tpu_custom_call.1} parent=11 // pred_region
          _
        $region24: #{tpu_custom_call.1} parent=11 // pred_fallthru
          _
        // Predicated region
        $region25: #{tpu_custom_call.1} parent=11 // pred_check
          %p391 = pneg %p164
        $region26: #{tpu_custom_call.1} parent=11 // pred_check_branch
          %393 = sbr.rel (%p391) target = $region28
        $region27: #{tpu_custom_call.1} parent=11 // pred_region
          %395 = vsyncadd [#allocation6], 0
          %s397 = sshll.u32 %s5, 4
          %s398 = int_to_ptr.hbm [resolvable:$true] %s397
          %s399 = sshll.u32 [#allocation7], 4
          %s400 = int_to_ptr.vmem [resolvable:$true] %s399
          %402 = dma.hbm_to_vmem [thread:$0]  %s398, 32, %s400, [#allocation6]
        $region28: #{tpu_custom_call.1} parent=11 // pred_fallthru
          _
        // Predicated region
        $region29: #{tpu_custom_call.1} parent=11 // pred_check
          %p403 = pneg %p185
        $region30: #{tpu_custom_call.1} parent=11 // pred_check_branch
          %405 = sbr.rel (%p403) target = $region32
        $region31: #{tpu_custom_call.1} parent=11 // pred_region
          _
        $region32: #{tpu_custom_call.1} parent=11 // pred_fallthru
          _
        // Predicated region
        $region33: #{tpu_custom_call.1} parent=11 // pred_check
          %p406 = pneg %p206
        $region34: #{tpu_custom_call.1} parent=11 // pred_check_branch
          %408 = sbr.rel (%p406) target = $region36
        $region35: #{tpu_custom_call.1} parent=11 // pred_region
          _
        $region36: #{tpu_custom_call.1} parent=11 // pred_fallthru
          _
        // Predicated region
        $region37: #{tpu_custom_call.1} parent=11 // pred_check
          %p409 = pneg %p227
        $region38: #{tpu_custom_call.1} parent=11 // pred_check_branch
          %411 = sbr.rel (%p409) target = $region40
        $region39: #{tpu_custom_call.1} parent=11 // pred_region
          _
        $region40: #{tpu_custom_call.1} parent=11 // pred_fallthru
          _
        // Predicated region
        $region41: #{tpu_custom_call.1} parent=11 // pred_check
          %p412 = pneg %p248
        $region42: #{tpu_custom_call.1} parent=11 // pred_check_branch
          %414 = sbr.rel (%p412) target = $region44
        $region43: #{tpu_custom_call.1} parent=11 // pred_region
          _
        $region44: #{tpu_custom_call.1} parent=11 // pred_fallthru
          _
        // Predicated region
        $region45: #{tpu_custom_call.1} parent=11 // pred_check
          %p415 = pneg %p269
        $region46: #{tpu_custom_call.1} parent=11 // pred_check_branch
          %417 = sbr.rel (%p415) target = $region48
        $region47: #{tpu_custom_call.1} parent=11 // pred_region
          %419 = vsyncadd [#allocation9], 0
          %s420 = sshll.u32 %s10, 4
          %s421 = int_to_ptr.hbm [resolvable:$true] %s420
          %s422 = sshll.u32 [#allocation8], 4
          %s423 = int_to_ptr.vmem [resolvable:$true] %s422
          %428 = dma.hbm_to_vmem [thread:$0]  %s421, 512, %s423, [#allocation9], 64, 64, 4
        $region48: #{tpu_custom_call.1} parent=11 // pred_fallthru
          _
        // Predicated region
        $region49: #{tpu_custom_call.1} parent=11 // pred_check
          %p429 = pneg %p290
        $region50: #{tpu_custom_call.1} parent=11 // pred_check_branch
          %431 = sbr.rel (%p429) target = $region52
        $region51: #{tpu_custom_call.1} parent=11 // pred_region
          _
        $region52: #{tpu_custom_call.1} parent=11 // pred_fallthru
          _
        // Predicated region
        $region53: #{tpu_custom_call.1} parent=11 // pred_check
          %p432 = pneg %p311
        $region54: #{tpu_custom_call.1} parent=11 // pred_check_branch
          %434 = sbr.rel (%p432) target = $region56
        $region55: #{tpu_custom_call.1} parent=11 // pred_region
          _
        $region56: #{tpu_custom_call.1} parent=11 // pred_fallthru
          _
        // Predicated region
        $region57: #{tpu_custom_call.1} parent=11 // pred_check
          %p435 = pneg %p332
        $region58: #{tpu_custom_call.1} parent=11 // pred_check_branch
          %437 = sbr.rel (%p435) target = $region60
        $region59: #{tpu_custom_call.1} parent=11 // pred_region
          _
        $region60: #{tpu_custom_call.1} parent=11 // pred_fallthru
          _
      $region12: #{tpu_custom_call.1} parent=5 // pred_fallthru
        _
      %p438 = scmp.lt.s32.totalorder %s28, 2
      // Predicated region
      $region61: #{tpu_custom_call.1} parent=5 // pred_check
        %p439 = pneg %p438
      $region62: #{tpu_custom_call.1} parent=5 // pred_check_branch
        %441 = sbr.rel (%p439) target = $region64
      $region63: #{tpu_custom_call.1} parent=5 // pred_region
        // Predicated region
        $region65: #{tpu_custom_call.1} parent=63 // pred_check
          %p442 = pneg %p48
        $region66: #{tpu_custom_call.1} parent=63 // pred_check_branch
          %444 = sbr.rel (%p442) target = $region68
        $region67: #{tpu_custom_call.1} parent=63 // pred_region
          %s445 = sand.u32 %s38, 1
          %s446 = scalar_lea.sflag [#allocation3], %s445
          %s447 = sand.u32 %s38, 1
          %s448 = smul.addr %s447, 8
          %s449 = scalar_lea.vmem [#allocation2], %s448
          %451 = vsyncadd %s446, 0
          %s452 = smul.addr %s28, 8
          %s453 = scalar_lea.hbm %s0, %s452
          %s455 = sshll.u32 %s453, 4
          %s456 = int_to_ptr.hbm [resolvable:$true] %s455
          %s457 = sshll.u32 %s449, 4
          %s458 = int_to_ptr.vmem [resolvable:$true] %s457
          %460 = dma.hbm_to_vmem [thread:$0]  %s456, 128, %s458, %s446
        $region68: #{tpu_custom_call.1} parent=63 // pred_fallthru
          _
        // Predicated region
        $region69: #{tpu_custom_call.1} parent=63 // pred_check
          %p461 = pneg %p74
        $region70: #{tpu_custom_call.1} parent=63 // pred_check_branch
          %463 = sbr.rel (%p461) target = $region72
        $region71: #{tpu_custom_call.1} parent=63 // pred_region
          %p464 = scmp.lt.s32.totalorder %s28, 1
          %s465 = scalar_select %p464, %s28, 1
          %s466 = scalar_lea.vmem %s1, %s465
        $region72: #{tpu_custom_call.1} parent=63 // pred_fallthru
          _
      $region64: #{tpu_custom_call.1} parent=5 // pred_fallthru
        _
      %p467 = scmp.le.s32.totalorder 1, %s28
      %p468 = scmp.lt.s32.totalorder %s28, 3
      %p469 = pnand %p467, %p468
      %p470 = pneg %p469
      // Predicated region
      $region73: #{tpu_custom_call.1} parent=5 // pred_check
        _
      $region74: #{tpu_custom_call.1} parent=5 // pred_check_branch
        %472 = sbr.rel (%p469) target = $region76
      $region75: #{tpu_custom_call.1} parent=5 // pred_region
        %s473 = ssub.s32 %s28, 1
        %s474 = sand.u32 %s41, 1
        %s475 = scalar_lea.sflag [#allocation3], %s474
        %s476 = sand.u32 %s41, 1
        %s477 = smul.addr %s476, 8
        %s478 = scalar_lea.vmem [#allocation2], %s477
        // Predicated region
        $region77: #{tpu_custom_call.1} parent=75 // pred_check
          %p479 = pneg %p54
        $region78: #{tpu_custom_call.1} parent=75 // pred_check_branch
          %481 = sbr.rel (%p479) target = $region80
        $region79: #{tpu_custom_call.1} parent=75 // pred_region
          %483 = dma.done %s475, 128
        $region80: #{tpu_custom_call.1} parent=75 // pred_fallthru
          _
        // Predicated region
        $region81: #{tpu_custom_call.1} parent=75 // pred_check
          %p484 = pneg %p122
        $region82: #{tpu_custom_call.1} parent=75 // pred_check_branch
          %486 = sbr.rel (%p484) target = $region84
        $region83: #{tpu_custom_call.1} parent=75 // pred_region
          %488 = dma.done [#allocation6], 16
        $region84: #{tpu_custom_call.1} parent=75 // pred_fallthru
          _
        // Predicated region
        $region85: #{tpu_custom_call.1} parent=75 // pred_check
          %p489 = pneg %p164
        $region86: #{tpu_custom_call.1} parent=75 // pred_check_branch
          %491 = sbr.rel (%p489) target = $region88
        $region87: #{tpu_custom_call.1} parent=75 // pred_region
          %493 = dma.done [#allocation6], 32
        $region88: #{tpu_custom_call.1} parent=75 // pred_fallthru
          _
        // Predicated region
        $region89: #{tpu_custom_call.1} parent=75 // pred_check
          %p494 = pneg %p269
        $region90: #{tpu_custom_call.1} parent=75 // pred_check_branch
          %496 = sbr.rel (%p494) target = $region92
        $region91: #{tpu_custom_call.1} parent=75 // pred_region
          %498 = dma.done [#allocation9], 512
        $region92: #{tpu_custom_call.1} parent=75 // pred_fallthru
          _
        %s499 = sand.u32 %s41, 1
        %s500 = scalar_lea.sflag [#allocation3], %s499
        %s501 = sand.u32 %s41, 1
        %s502 = smul.addr %s501, 8
        %s503 = scalar_lea.vmem [#allocation2], %s502
        %p504 = pneg %p54
        %p505 = pneg %p51
        %p506 = scmp.lt.s32.totalorder %s33, 1
        %s507 = scalar_select %p506, %s33, 1
        %s508 = scalar_lea.vmem %s1, %s507
        %p509 = pneg %p80
        %p510 = pneg %p77
        %p511 = pneg %p101
        %p512 = pneg %p98
        %p513 = pneg %p122
        %p514 = pneg %p119
        %p515 = pneg %p143
        %p516 = pneg %p140
        %p517 = pneg %p164
        %p518 = pneg %p161
        %p519 = pneg %p185
        %p520 = pneg %p182
        %p521 = pneg %p206
        %p522 = pneg %p203
        %p523 = pneg %p227
        %p524 = pneg %p224
        %p525 = pneg %p248
        %p526 = pneg %p245
        %p527 = pneg %p269
        %p528 = pneg %p266
        %p529 = pneg %p290
        %p530 = pneg %p287
        %p531 = pneg %p311
        %p532 = pneg %p308
        %p533 = pneg %p332
        %p534 = pneg %p329
        %p535 = pneg %p358
        %p536 = pneg %p355
        %s537 = sand.u32 %s345, 1
        %s538 = scalar_lea.sflag [#allocation4], %s537
        %s539 = sand.u32 %s345, 1
        %s540 = smul.addr %s539, 8
        %s541 = scalar_lea.vmem [#allocation10], %s540
        %p542 = scmp.lt.s32.totalorder %s33, 1
        %s543 = scalar_select %p542, %s33, 1
        %s544 = scalar_lea.vmem %s1, %s543
        %v546 = vld [vmem:[%s478] sm:$0xff]
        %v547 = vld [vmem:[%s544] sm:$0x1]
        %v548 = vld [vmem:[%s2] sm:$0x1]
        %v549 = vld [vmem:[#allocation5] sm:$0x1]
        %vm550 = vcmask 523264
        %v551 = vsel %vm550, %v546, 0.0
        %552 = vadd.xlane.f32.xlu0 %v551
        %v553 = vpop.xlane.xlu0 %552
        %v554 = vrcp.pop 64.0
        %v555 = vmul.f32 64.0, %v554
        %v556 = vsub.f32 1.0, %v555
        %v557 = vmul.f32 %v554, %v556
        %v558 = vadd.f32 %v554, %v557
        %vm559 = vweird.f32 %v554
        %v560 = vsel %vm559, %v554, %v558
        %v561 = vmul.f32 %v553, %v560
        %v562 = vsub.f32 %v546, %v561
        %v563 = vmul.f32 %v562, %v562
        %v564 = vsel %vm550, %v563, 0.0
        %565 = vadd.xlane.f32.xlu0 %v564
        %v566 = vpop.xlane.xlu0 %565
        %v567 = vmul.f32 %v566, 0.015873017
        %v568 = vrsqrt.pop %v567
        %v569 = vmul.f32 %v568, %v567
        %v570 = vmul.f32 %v569, %v568
        %v571 = vmul.f32 0.5, %v570
        %v572 = vsub.f32 1.5, %v571
        %v573 = vmul.f32 %v568, %v572
        %v574 = vmul.f32 %v567, %v573
        %vm575 = vcmp.eq.f32.partialorder %v567, inf
        %v576 = vsel %vm575, %v567, %v574
        %vm577 = vcmp.eq.f32.partialorder %v567, 0.0
        %v578 = vand.u32 %v567, 2147483648
        %v579 = vsel %vm577, %v578, %v576
        %v580 = vadd.f32 %v579, 1e-06
        %v581 = vrcp.pop %v580
        %v582 = vmul.f32 %v580, %v581
        %v583 = vsub.f32 1.0, %v582
        %v584 = vmul.f32 %v581, %v583
        %v585 = vadd.f32 %v581, %v584
        %vm586 = vweird.f32 %v580
        %vm587 = vweird.f32 %v581
        %vm588 = vmor %vm586, %vm587
        %v589 = vsel %vm588, %v581, %v585
        %v590 = vand.u32 2147483647, %v580
        %vm591 = vcmp.eq.f32.partialorder %v590, 8.507059e+37
        %v592 = vand.u32 %v580, 2147483648
        %v593 = vor.u32 1.1754944e-38, %v592
        %v594 = vsel %vm591, %v593, %v589
        %v595 = vmul.f32 %v562, %v594
        %v597 = vperm.slane %v548, 0
        %v599 = vmul.f32 %v595, %v597
        %v601 = vperm.slane %v549, 0
        %v603 = vadd.f32 %v599, %v601
        %v604 = vpack.c.bf16 %v603, %v603
        %v605 = vld [vmem:[%s4] sm:$0xff]
        %v606 = vld [vmem:[%s4 + $0x8] sm:$0xff]
        %v607 = vld [vmem:[%s4 + $0x10] sm:$0xff]
        %v608 = vld [vmem:[%s4 + $0x18] sm:$0xff]
        %v609 = vld [vmem:[%s4 + $0x20] sm:$0xff]
        %v610 = vld [vmem:[%s4 + $0x28] sm:$0xff]
        %v611 = vld [vmem:[%s4 + $0x30] sm:$0xff]
        %v612 = vld [vmem:[%s4 + $0x38] sm:$0xff]
        %v613 = vld [vmem:[#allocation7] sm:$0x3]
        %v615 = vperm.slane %v613, 0
        %v616 = vperm.slane %v613, 1
        %v627 = vunpack.c.l.b16 %v605
        %v628 = vunpack.c.h.b16 %v605
        %v629 = vunpack.c.l.b16 %v606
        %v630 = vunpack.c.h.b16 %v606
        %v631 = vunpack.c.l.b16 %v607
        %v632 = vunpack.c.h.b16 %v607
        %v633 = vunpack.c.l.b16 %v608
        %v634 = vunpack.c.h.b16 %v608
        %v635 = vunpack.c.l.b16 %v609
        %v636 = vunpack.c.h.b16 %v609
        %v637 = vunpack.c.l.b16 %v610
        %v638 = vunpack.c.h.b16 %v610
        %v639 = vunpack.c.l.b16 %v611
        %v640 = vunpack.c.h.b16 %v611
        %v641 = vunpack.c.l.b16 %v612
        %v642 = vunpack.c.h.b16 %v612
        %v643 = vpack.c.b16 %v629, %v627
        %v644 = vpack.c.b16 %v630, %v628
        %v645 = vpack.c.b16 %v633, %v631
        %v646 = vpack.c.b16 %v634, %v632
        %v647 = vpack.c.b16 %v637, %v635
        %v648 = vpack.c.b16 %v638, %v636
        %v649 = vpack.c.b16 %v641, %v639
        %v650 = vpack.c.b16 %v642, %v640
        %v660 = vsel %vm550, %v604, 0
        %662 = vmatpush.bf16.msra.mxu0 0
        %663 = vmatpush.bf16.msra.mxu0 0
        %664 = vmatpush.bf16.msra.mxu0 0
        %665 = vmatpush.bf16.msra.mxu0 0
        %666 = vmatpush.bf16.msra.mxu0 %v649
        %667 = vmatpush.bf16.msra.mxu0 %v647
        %668 = vmatpush.bf16.msra.mxu0 %v645
        %669 = vmatpush.bf16.msra.mxu0 %v643
        %670 = vmatmul.bf16.gmra.mxu0 %v660
        %v671 = vpop.f32.mrf.mxu0
        %v672 = vadd.f32 %v615, %v671
        %v673 = vpop.f32.mrf.mxu0
        %674 = vdwg.mxu0
        %675 = vmatpush.bf16.msra.mxu0 0
        %676 = vmatpush.bf16.msra.mxu0 0
        %677 = vmatpush.bf16.msra.mxu0 0
        %678 = vmatpush.bf16.msra.mxu0 0
        %679 = vmatpush.bf16.msra.mxu0 %v650
        %680 = vmatpush.bf16.msra.mxu0 %v648
        %681 = vmatpush.bf16.msra.mxu0 %v646
        %682 = vmatpush.bf16.msra.mxu0 %v644
        %683 = vmatmul.bf16.gmra.mxu0 %v660
        %v684 = vpop.f32.mrf.mxu0
        %v685 = vadd.f32 %v616, %v684
        %v686 = vpop.f32.mrf.mxu0
        %687 = vdwg.mxu0
        %v688 = vpack.c.bf16 %v672, %v672
        %v689 = vpack.c.bf16 %v685, %v685
        %v691 = vperm.slane %v547, 0
        %694 = vrot.lane.b32.xlu0 %v688, 64
        %v695 = vpop.permute.xlu0 %694
        %vm696 = vcmask 64512
        %v698 = vsel %vm696, %v688, 0
        %v701 = vsel %vm696, %v695, 0
        %703 = vmatpush.bf16.xpose.msra.mxu0 0
        %704 = vmatpush.bf16.xpose.msra.mxu0 0
        %705 = vmatpush.bf16.xpose.msra.mxu0 0
        %706 = vmatpush.bf16.xpose.msra.mxu0 0
        %707 = vmatpush.bf16.xpose.msra.mxu0 0
        %708 = vmatpush.bf16.xpose.msra.mxu0 0
        %709 = vmatpush.bf16.xpose.msra.mxu0 0
        %710 = vmatpush.bf16.xpose.msra.mxu0 %v701
        %711 = vmatmul.bf16.gmra.mxu0 %v698
        %v712 = vpop.f32.mrf.mxu0
        %v713 = vadd.f32 %v691, %v712
        %v714 = vpop.f32.mrf.mxu0
        %715 = vdwg.mxu0
        %v716 = vsel %vm696, %v713, -inf
        %717 = vmax.xlane.f32.xlu0 %v716
        %v718 = vpop.xlane.xlu0 %717
        %v719 = vsub.f32 %v713, %v718
        %v720 = vmul.f32 %v719, 1.442695
        %v721 = vpow.pop %v720
        %v722 = vsel %vm696, %v721, 0.0
        %723 = vadd.xlane.f32.xlu0 %v722
        %v724 = vpop.xlane.xlu0 %723
        %v725 = vrcp.pop %v724
        %v726 = vmul.f32 %v721, %v725
        %v727 = vpack.c.bf16 %v726, %v726
        %v729 = vsel %vm696, %v727, 0
        %vm731 = vcmask 1043456
        %v733 = vsel %vm731, %v689, 0
        %735 = vmatpush.bf16.msra.mxu0 0
        %736 = vmatpush.bf16.msra.mxu0 0
        %737 = vmatpush.bf16.msra.mxu0 0
        %738 = vmatpush.bf16.msra.mxu0 0
        %739 = vmatpush.bf16.msra.mxu0 0
        %740 = vmatpush.bf16.msra.mxu0 0
        %741 = vmatpush.bf16.msra.mxu0 0
        %742 = vmatpush.bf16.msra.mxu0 %v733
        %743 = vmatmul.bf16.gmra.mxu0 %v729
        %v744 = vpop.f32.mrf.mxu0
        %v745 = vadd.f32 0.0, %v744
        %v746 = vpop.f32.mrf.mxu0
        %747 = vdwg.mxu0
        %748 = vrot.lane.b32.xlu0 %v688, 120
        %v749 = vpop.permute.xlu0 %748
        %750 = vrot.lane.b32.xlu0 %v688, 56
        %v751 = vpop.permute.xlu0 %750
        %v753 = vsel %vm696, %v749, 0
        %v756 = vsel %vm696, %v751, 0
        %758 = vmatpush.bf16.xpose.msra.mxu0 0
        %759 = vmatpush.bf16.xpose.msra.mxu0 0
        %760 = vmatpush.bf16.xpose.msra.mxu0 0
        %761 = vmatpush.bf16.xpose.msra.mxu0 0
        %762 = vmatpush.bf16.xpose.msra.mxu0 0
        %763 = vmatpush.bf16.xpose.msra.mxu0 0
        %764 = vmatpush.bf16.xpose.msra.mxu0 0
        %765 = vmatpush.bf16.xpose.msra.mxu0 %v756
        %766 = vmatmul.bf16.gmra.mxu0 %v753
        %v767 = vpop.f32.mrf.mxu0
        %v768 = vadd.f32 %v691, %v767
        %v769 = vpop.f32.mrf.mxu0
        %770 = vdwg.mxu0
        %v771 = vsel %vm696, %v768, -inf
        %772 = vmax.xlane.f32.xlu0 %v771
        %v773 = vpop.xlane.xlu0 %772
        %v774 = vsub.f32 %v768, %v773
        %v775 = vmul.f32 %v774, 1.442695
        %v776 = vpow.pop %v775
        %v777 = vsel %vm696, %v776, 0.0
        %778 = vadd.xlane.f32.xlu0 %v777
        %v779 = vpop.xlane.xlu0 %778
        %v780 = vrcp.pop %v779
        %v781 = vmul.f32 %v776, %v780
        %v782 = vpack.c.bf16 %v781, %v781
        %784 = vrot.lane.b32.xlu0 %v689, 120
        %v785 = vpop.permute.xlu0 %784
        %v787 = vsel %vm696, %v782, 0
        %v790 = vsel %vm731, %v785, 0
        %792 = vmatpush.bf16.msra.mxu0 0
        %793 = vmatpush.bf16.msra.mxu0 0
        %794 = vmatpush.bf16.msra.mxu0 0
        %795 = vmatpush.bf16.msra.mxu0 0
        %796 = vmatpush.bf16.msra.mxu0 0
        %797 = vmatpush.bf16.msra.mxu0 0
        %798 = vmatpush.bf16.msra.mxu0 0
        %799 = vmatpush.bf16.msra.mxu0 %v790
        %800 = vmatmul.bf16.gmra.mxu0 %v787
        %v801 = vpop.f32.mrf.mxu0
        %v802 = vadd.f32 0.0, %v801
        %v803 = vpop.f32.mrf.mxu0
        %804 = vdwg.mxu0
        %805 = vrot.lane.b32.xlu0 %v688, 112
        %v806 = vpop.permute.xlu0 %805
        %807 = vrot.lane.b32.xlu0 %v688, 48
        %v808 = vpop.permute.xlu0 %807
        %v810 = vsel %vm696, %v806, 0
        %v813 = vsel %vm696, %v808, 0
        %815 = vmatpush.bf16.xpose.msra.mxu0 0
        %816 = vmatpush.bf16.xpose.msra.mxu0 0
        %817 = vmatpush.bf16.xpose.msra.mxu0 0
        %818 = vmatpush.bf16.xpose.msra.mxu0 0
        %819 = vmatpush.bf16.xpose.msra.mxu0 0
        %820 = vmatpush.bf16.xpose.msra.mxu0 0
        %821 = vmatpush.bf16.xpose.msra.mxu0 0
        %822 = vmatpush.bf16.xpose.msra.mxu0 %v813
        %823 = vmatmul.bf16.gmra.mxu0 %v810
        %v824 = vpop.f32.mrf.mxu0
        %v825 = vadd.f32 %v691, %v824
        %v826 = vpop.f32.mrf.mxu0
        %827 = vdwg.mxu0
        %v828 = vsel %vm696, %v825, -inf
        %829 = vmax.xlane.f32.xlu0 %v828
        %v830 = vpop.xlane.xlu0 %829
        %v831 = vsub.f32 %v825, %v830
        %v832 = vmul.f32 %v831, 1.442695
        %v833 = vpow.pop %v832
        %v834 = vsel %vm696, %v833, 0.0
        %835 = vadd.xlane.f32.xlu0 %v834
        %v836 = vpop.xlane.xlu0 %835
        %v837 = vrcp.pop %v836
        %v838 = vmul.f32 %v833, %v837
        %v839 = vpack.c.bf16 %v838, %v838
        %840 = vrot.lane.b32.xlu0 %v689, 112
        %v841 = vpop.permute.xlu0 %840
        %v843 = vsel %vm696, %v839, 0
        %v846 = vsel %vm731, %v841, 0
        %848 = vmatpush.bf16.msra.mxu0 0
        %849 = vmatpush.bf16.msra.mxu0 0
        %850 = vmatpush.bf16.msra.mxu0 0
        %851 = vmatpush.bf16.msra.mxu0 0
        %852 = vmatpush.bf16.msra.mxu0 0
        %853 = vmatpush.bf16.msra.mxu0 0
        %854 = vmatpush.bf16.msra.mxu0 0
        %855 = vmatpush.bf16.msra.mxu0 %v846
        %856 = vmatmul.bf16.gmra.mxu0 %v843
        %v857 = vpop.f32.mrf.mxu0
        %v858 = vadd.f32 0.0, %v857
        %v859 = vpop.f32.mrf.mxu0
        %860 = vdwg.mxu0
        %861 = vrot.lane.b32.xlu0 %v688, 104
        %v862 = vpop.permute.xlu0 %861
        %863 = vrot.lane.b32.xlu0 %v688, 40
        %v864 = vpop.permute.xlu0 %863
        %v866 = vsel %vm696, %v862, 0
        %v869 = vsel %vm696, %v864, 0
        %871 = vmatpush.bf16.xpose.msra.mxu0 0
        %872 = vmatpush.bf16.xpose.msra.mxu0 0
        %873 = vmatpush.bf16.xpose.msra.mxu0 0
        %874 = vmatpush.bf16.xpose.msra.mxu0 0
        %875 = vmatpush.bf16.xpose.msra.mxu0 0
        %876 = vmatpush.bf16.xpose.msra.mxu0 0
        %877 = vmatpush.bf16.xpose.msra.mxu0 0
        %878 = vmatpush.bf16.xpose.msra.mxu0 %v869
        %879 = vmatmul.bf16.gmra.mxu0 %v866
        %v880 = vpop.f32.mrf.mxu0
        %v881 = vadd.f32 %v691, %v880
        %v882 = vpop.f32.mrf.mxu0
        %883 = vdwg.mxu0
        %v884 = vsel %vm696, %v881, -inf
        %885 = vmax.xlane.f32.xlu0 %v884
        %v886 = vpop.xlane.xlu0 %885
        %v887 = vsub.f32 %v881, %v886
        %v888 = vmul.f32 %v887, 1.442695
        %v889 = vpow.pop %v888
        %v890 = vsel %vm696, %v889, 0.0
        %891 = vadd.xlane.f32.xlu0 %v890
        %v892 = vpop.xlane.xlu0 %891
        %v893 = vrcp.pop %v892
        %v894 = vmul.f32 %v889, %v893
        %v895 = vpack.c.bf16 %v894, %v894
        %896 = vrot.lane.b32.xlu0 %v689, 104
        %v897 = vpop.permute.xlu0 %896
        %v899 = vsel %vm696, %v895, 0
        %v902 = vsel %vm731, %v897, 0
        %904 = vmatpush.bf16.msra.mxu0 0
        %905 = vmatpush.bf16.msra.mxu0 0
        %906 = vmatpush.bf16.msra.mxu0 0
        %907 = vmatpush.bf16.msra.mxu0 0
        %908 = vmatpush.bf16.msra.mxu0 0
        %909 = vmatpush.bf16.msra.mxu0 0
        %910 = vmatpush.bf16.msra.mxu0 0
        %911 = vmatpush.bf16.msra.mxu0 %v902
        %912 = vmatmul.bf16.gmra.mxu0 %v899
        %v913 = vpop.f32.mrf.mxu0
        %v914 = vadd.f32 0.0, %v913
        %v915 = vpop.f32.mrf.mxu0
        %916 = vdwg.mxu0
        %917 = vrot.lane.b32.xlu0 %v688, 96
        %v918 = vpop.permute.xlu0 %917
        %919 = vrot.lane.b32.xlu0 %v688, 32
        %v920 = vpop.permute.xlu0 %919
        %v922 = vsel %vm696, %v918, 0
        %v925 = vsel %vm696, %v920, 0
        %927 = vmatpush.bf16.xpose.msra.mxu0 0
        %928 = vmatpush.bf16.xpose.msra.mxu0 0
        %929 = vmatpush.bf16.xpose.msra.mxu0 0
        %930 = vmatpush.bf16.xpose.msra.mxu0 0
        %931 = vmatpush.bf16.xpose.msra.mxu0 0
        %932 = vmatpush.bf16.xpose.msra.mxu0 0
        %933 = vmatpush.bf16.xpose.msra.mxu0 0
        %934 = vmatpush.bf16.xpose.msra.mxu0 %v925
        %935 = vmatmul.bf16.gmra.mxu0 %v922
        %v936 = vpop.f32.mrf.mxu0
        %v937 = vadd.f32 %v691, %v936
        %v938 = vpop.f32.mrf.mxu0
        %939 = vdwg.mxu0
        %v940 = vsel %vm696, %v937, -inf
        %941 = vmax.xlane.f32.xlu0 %v940
        %v942 = vpop.xlane.xlu0 %941
        %v943 = vsub.f32 %v937, %v942
        %v944 = vmul.f32 %v943, 1.442695
        %v945 = vpow.pop %v944
        %v946 = vsel %vm696, %v945, 0.0
        %947 = vadd.xlane.f32.xlu0 %v946
        %v948 = vpop.xlane.xlu0 %947
        %v949 = vrcp.pop %v948
        %v950 = vmul.f32 %v945, %v949
        %v951 = vpack.c.bf16 %v950, %v950
        %952 = vrot.lane.b32.xlu0 %v689, 96
        %v953 = vpop.permute.xlu0 %952
        %v955 = vsel %vm696, %v951, 0
        %v958 = vsel %vm731, %v953, 0
        %960 = vmatpush.bf16.msra.mxu0 0
        %961 = vmatpush.bf16.msra.mxu0 0
        %962 = vmatpush.bf16.msra.mxu0 0
        %963 = vmatpush.bf16.msra.mxu0 0
        %964 = vmatpush.bf16.msra.mxu0 0
        %965 = vmatpush.bf16.msra.mxu0 0
        %966 = vmatpush.bf16.msra.mxu0 0
        %967 = vmatpush.bf16.msra.mxu0 %v958
        %968 = vmatmul.bf16.gmra.mxu0 %v955
        %v969 = vpop.f32.mrf.mxu0
        %v970 = vadd.f32 0.0, %v969
        %v971 = vpop.f32.mrf.mxu0
        %972 = vdwg.mxu0
        %973 = vrot.lane.b32.xlu0 %v688, 88
        %v974 = vpop.permute.xlu0 %973
        %975 = vrot.lane.b32.xlu0 %v688, 24
        %v976 = vpop.permute.xlu0 %975
        %v978 = vsel %vm696, %v974, 0
        %v981 = vsel %vm696, %v976, 0
        %983 = vmatpush.bf16.xpose.msra.mxu0 0
        %984 = vmatpush.bf16.xpose.msra.mxu0 0
        %985 = vmatpush.bf16.xpose.msra.mxu0 0
        %986 = vmatpush.bf16.xpose.msra.mxu0 0
        %987 = vmatpush.bf16.xpose.msra.mxu0 0
        %988 = vmatpush.bf16.xpose.msra.mxu0 0
        %989 = vmatpush.bf16.xpose.msra.mxu0 0
        %990 = vmatpush.bf16.xpose.msra.mxu0 %v981
        %991 = vmatmul.bf16.gmra.mxu0 %v978
        %v992 = vpop.f32.mrf.mxu0
        %v993 = vadd.f32 %v691, %v992
        %v994 = vpop.f32.mrf.mxu0
        %995 = vdwg.mxu0
        %v996 = vsel %vm696, %v993, -inf
        %997 = vmax.xlane.f32.xlu0 %v996
        %v998 = vpop.xlane.xlu0 %997
        %v999 = vsub.f32 %v993, %v998
        %v1000 = vmul.f32 %v999, 1.442695
        %v1001 = vpow.pop %v1000
        %v1002 = vsel %vm696, %v1001, 0.0
        %1003 = vadd.xlane.f32.xlu0 %v1002
        %v1004 = vpop.xlane.xlu0 %1003
        %v1005 = vrcp.pop %v1004
        %v1006 = vmul.f32 %v1001, %v1005
        %v1007 = vpack.c.bf16 %v1006, %v1006
        %1008 = vrot.lane.b32.xlu0 %v689, 88
        %v1009 = vpop.permute.xlu0 %1008
        %v1011 = vsel %vm696, %v1007, 0
        %v1014 = vsel %vm731, %v1009, 0
        %1016 = vmatpush.bf16.msra.mxu0 0
        %1017 = vmatpush.bf16.msra.mxu0 0
        %1018 = vmatpush.bf16.msra.mxu0 0
        %1019 = vmatpush.bf16.msra.mxu0 0
        %1020 = vmatpush.bf16.msra.mxu0 0
        %1021 = vmatpush.bf16.msra.mxu0 0
        %1022 = vmatpush.bf16.msra.mxu0 0
        %1023 = vmatpush.bf16.msra.mxu0 %v1014
        %1024 = vmatmul.bf16.gmra.mxu0 %v1011
        %v1025 = vpop.f32.mrf.mxu0
        %v1026 = vadd.f32 0.0, %v1025
        %v1027 = vpop.f32.mrf.mxu0
        %1028 = vdwg.mxu0
        %1029 = vrot.lane.b32.xlu0 %v688, 80
        %v1030 = vpop.permute.xlu0 %1029
        %1031 = vrot.lane.b32.xlu0 %v688, 16
        %v1032 = vpop.permute.xlu0 %1031
        %v1034 = vsel %vm696, %v1030, 0
        %v1037 = vsel %vm696, %v1032, 0
        %1039 = vmatpush.bf16.xpose.msra.mxu0 0
        %1040 = vmatpush.bf16.xpose.msra.mxu0 0
        %1041 = vmatpush.bf16.xpose.msra.mxu0 0
        %1042 = vmatpush.bf16.xpose.msra.mxu0 0
        %1043 = vmatpush.bf16.xpose.msra.mxu0 0
        %1044 = vmatpush.bf16.xpose.msra.mxu0 0
        %1045 = vmatpush.bf16.xpose.msra.mxu0 0
        %1046 = vmatpush.bf16.xpose.msra.mxu0 %v1037
        %1047 = vmatmul.bf16.gmra.mxu0 %v1034
        %v1048 = vpop.f32.mrf.mxu0
        %v1049 = vadd.f32 %v691, %v1048
        %v1050 = vpop.f32.mrf.mxu0
        %1051 = vdwg.mxu0
        %v1052 = vsel %vm696, %v1049, -inf
        %1053 = vmax.xlane.f32.xlu0 %v1052
        %v1054 = vpop.xlane.xlu0 %1053
        %v1055 = vsub.f32 %v1049, %v1054
        %v1056 = vmul.f32 %v1055, 1.442695
        %v1057 = vpow.pop %v1056
        %v1058 = vsel %vm696, %v1057, 0.0
        %1059 = vadd.xlane.f32.xlu0 %v1058
        %v1060 = vpop.xlane.xlu0 %1059
        %v1061 = vrcp.pop %v1060
        %v1062 = vmul.f32 %v1057, %v1061
        %v1063 = vpack.c.bf16 %v1062, %v1062
        %1064 = vrot.lane.b32.xlu0 %v689, 80
        %v1065 = vpop.permute.xlu0 %1064
        %v1067 = vsel %vm696, %v1063, 0
        %v1070 = vsel %vm731, %v1065, 0
        %1072 = vmatpush.bf16.msra.mxu0 0
        %1073 = vmatpush.bf16.msra.mxu0 0
        %1074 = vmatpush.bf16.msra.mxu0 0
        %1075 = vmatpush.bf16.msra.mxu0 0
        %1076 = vmatpush.bf16.msra.mxu0 0
        %1077 = vmatpush.bf16.msra.mxu0 0
        %1078 = vmatpush.bf16.msra.mxu0 0
        %1079 = vmatpush.bf16.msra.mxu0 %v1070
        %1080 = vmatmul.bf16.gmra.mxu0 %v1067
        %v1081 = vpop.f32.mrf.mxu0
        %v1082 = vadd.f32 0.0, %v1081
        %v1083 = vpop.f32.mrf.mxu0
        %1084 = vdwg.mxu0
        %1085 = vrot.lane.b32.xlu0 %v688, 72
        %v1086 = vpop.permute.xlu0 %1085
        %1087 = vrot.lane.b32.xlu0 %v688, 8
        %v1088 = vpop.permute.xlu0 %1087
        %v1090 = vsel %vm696, %v1086, 0
        %v1093 = vsel %vm696, %v1088, 0
        %1095 = vmatpush.bf16.xpose.msra.mxu0 0
        %1096 = vmatpush.bf16.xpose.msra.mxu0 0
        %1097 = vmatpush.bf16.xpose.msra.mxu0 0
        %1098 = vmatpush.bf16.xpose.msra.mxu0 0
        %1099 = vmatpush.bf16.xpose.msra.mxu0 0
        %1100 = vmatpush.bf16.xpose.msra.mxu0 0
        %1101 = vmatpush.bf16.xpose.msra.mxu0 0
        %1102 = vmatpush.bf16.xpose.msra.mxu0 %v1093
        %1103 = vmatmul.bf16.gmra.mxu0 %v1090
        %v1104 = vpop.f32.mrf.mxu0
        %v1105 = vadd.f32 %v691, %v1104
        %v1106 = vpop.f32.mrf.mxu0
        %1107 = vdwg.mxu0
        %v1108 = vsel %vm696, %v1105, -inf
        %1109 = vmax.xlane.f32.xlu0 %v1108
        %v1110 = vpop.xlane.xlu0 %1109
        %v1111 = vsub.f32 %v1105, %v1110
        %v1112 = vmul.f32 %v1111, 1.442695
        %v1113 = vpow.pop %v1112
        %v1114 = vsel %vm696, %v1113, 0.0
        %1115 = vadd.xlane.f32.xlu0 %v1114
        %v1116 = vpop.xlane.xlu0 %1115
        %v1117 = vrcp.pop %v1116
        %v1118 = vmul.f32 %v1113, %v1117
        %v1119 = vpack.c.bf16 %v1118, %v1118
        %1120 = vrot.lane.b32.xlu0 %v689, 72
        %v1121 = vpop.permute.xlu0 %1120
        %v1123 = vsel %vm696, %v1119, 0
        %v1126 = vsel %vm731, %v1121, 0
        %1128 = vmatpush.bf16.msra.mxu0 0
        %1129 = vmatpush.bf16.msra.mxu0 0
        %1130 = vmatpush.bf16.msra.mxu0 0
        %1131 = vmatpush.bf16.msra.mxu0 0
        %1132 = vmatpush.bf16.msra.mxu0 0
        %1133 = vmatpush.bf16.msra.mxu0 0
        %1134 = vmatpush.bf16.msra.mxu0 0
        %1135 = vmatpush.bf16.msra.mxu0 %v1126
        %1136 = vmatmul.bf16.gmra.mxu0 %v1123
        %v1137 = vpop.f32.mrf.mxu0
        %v1138 = vadd.f32 0.0, %v1137
        %v1139 = vpop.f32.mrf.mxu0
        %1140 = vdwg.mxu0
        %1142 = vrot.lane.b32.xlu0 %v802, 8
        %v1143 = vpop.permute.xlu0 %1142
        %1146 = vrot.lane.b32.xlu0 %v858, 16
        %v1147 = vpop.permute.xlu0 %1146
        %1150 = vrot.lane.b32.xlu0 %v914, 24
        %v1151 = vpop.permute.xlu0 %1150
        %1154 = vrot.lane.b32.xlu0 %v970, 32
        %v1155 = vpop.permute.xlu0 %1154
        %1158 = vrot.lane.b32.xlu0 %v1026, 40
        %v1159 = vpop.permute.xlu0 %1158
        %1162 = vrot.lane.b32.xlu0 %v1082, 48
        %v1163 = vpop.permute.xlu0 %1162
        %1166 = vrot.lane.b32.xlu0 %v1138, 56
        %v1167 = vpop.permute.xlu0 %1166
        %v1169 = vsel %vm696, %v745, %v1143
        %vm1170 = vcmask 130048
        %v1171 = vsel %vm1170, %v1169, %v1147
        %vm1172 = vcmask 195584
        %v1173 = vsel %vm1172, %v1171, %v1151
        %vm1174 = vcmask 261120
        %v1175 = vsel %vm1174, %v1173, %v1155
        %vm1176 = vcmask 326656
        %v1177 = vsel %vm1176, %v1175, %v1159
        %vm1178 = vcmask 392192
        %v1179 = vsel %vm1178, %v1177, %v1163
        %vm1180 = vcmask 457728
        %v1181 = vsel %vm1180, %v1179, %v1167
        %v1182 = vpack.c.bf16 %v1181, %v1181
        %v1183 = vld [vmem:[%s6] sm:$0xf]
        %v1184 = vld [vmem:[%s6 + $0x4] sm:$0xf]
        %v1185 = vld [vmem:[%s6 + $0x8] sm:$0xf]
        %v1186 = vld [vmem:[%s6 + $0xc] sm:$0xf]
        %v1187 = vld [vmem:[%s6 + $0x10] sm:$0xf]
        %v1188 = vld [vmem:[%s6 + $0x14] sm:$0xf]
        %v1189 = vld [vmem:[%s6 + $0x18] sm:$0xf]
        %v1190 = vld [vmem:[%s6 + $0x1c] sm:$0xf]
        %v1191 = vld [vmem:[%s7] sm:$0x1]
        %v1193 = vperm.slane %v1191, 0
        %v1203 = vunpack.c.l.b16 %v1183
        %v1204 = vunpack.c.l.b16 %v1184
        %v1205 = vunpack.c.l.b16 %v1185
        %v1206 = vunpack.c.l.b16 %v1186
        %v1207 = vunpack.c.l.b16 %v1187
        %v1208 = vunpack.c.l.b16 %v1188
        %v1209 = vunpack.c.l.b16 %v1189
        %v1210 = vunpack.c.l.b16 %v1190
        %v1211 = vpack.c.b16 %v1204, %v1203
        %v1212 = vpack.c.b16 %v1206, %v1205
        %v1213 = vpack.c.b16 %v1208, %v1207
        %v1214 = vpack.c.b16 %v1210, %v1209
        %v1220 = vsel %vm550, %v1182, 0
        %1222 = vmatpush.bf16.msra.mxu0 0
        %1223 = vmatpush.bf16.msra.mxu0 0
        %1224 = vmatpush.bf16.msra.mxu0 0
        %1225 = vmatpush.bf16.msra.mxu0 0
        %1226 = vmatpush.bf16.msra.mxu0 %v1214
        %1227 = vmatpush.bf16.msra.mxu0 %v1213
        %1228 = vmatpush.bf16.msra.mxu0 %v1212
        %1229 = vmatpush.bf16.msra.mxu0 %v1211
        %1230 = vmatmul.bf16.gmra.mxu0 %v1220
        %v1231 = vpop.f32.mrf.mxu0
        %v1232 = vadd.f32 %v1193, %v1231
        %v1233 = vpop.f32.mrf.mxu0
        %1234 = vdwg.mxu0
        %v1235 = vadd.f32 %v1232, %v546
        %v1236 = vld [vmem:[%s8] sm:$0x1]
        %v1237 = vld [vmem:[%s9] sm:$0x1]
        %v1238 = vsel %vm550, %v1235, 0.0
        %1239 = vadd.xlane.f32.xlu0 %v1238
        %v1240 = vpop.xlane.xlu0 %1239
        %v1241 = vmul.f32 %v1240, %v560
        %v1242 = vsub.f32 %v1235, %v1241
        %v1243 = vmul.f32 %v1242, %v1242
        %v1244 = vsel %vm550, %v1243, 0.0
        %1245 = vadd.xlane.f32.xlu0 %v1244
        %v1246 = vpop.xlane.xlu0 %1245
        %v1247 = vmul.f32 %v1246, 0.015873017
        %v1248 = vrsqrt.pop %v1247
        %v1249 = vmul.f32 %v1248, %v1247
        %v1250 = vmul.f32 %v1249, %v1248
        %v1251 = vmul.f32 0.5, %v1250
        %v1252 = vsub.f32 1.5, %v1251
        %v1253 = vmul.f32 %v1248, %v1252
        %v1254 = vmul.f32 %v1247, %v1253
        %vm1255 = vcmp.eq.f32.partialorder %v1247, inf
        %v1256 = vsel %vm1255, %v1247, %v1254
        %vm1257 = vcmp.eq.f32.partialorder %v1247, 0.0
        %v1258 = vand.u32 %v1247, 2147483648
        %v1259 = vsel %vm1257, %v1258, %v1256
        %v1260 = vadd.f32 %v1259, 1e-06
        %v1261 = vrcp.pop %v1260
        %v1262 = vmul.f32 %v1260, %v1261
        %v1263 = vsub.f32 1.0, %v1262
        %v1264 = vmul.f32 %v1261, %v1263
        %v1265 = vadd.f32 %v1261, %v1264
        %vm1266 = vweird.f32 %v1260
        %vm1267 = vweird.f32 %v1261
        %vm1268 = vmor %vm1266, %vm1267
        %v1269 = vsel %vm1268, %v1261, %v1265
        %v1270 = vand.u32 2147483647, %v1260
        %vm1271 = vcmp.eq.f32.partialorder %v1270, 8.507059e+37
        %v1272 = vand.u32 %v1260, 2147483648
        %v1273 = vor.u32 1.1754944e-38, %v1272
        %v1274 = vsel %vm1271, %v1273, %v1269
        %v1275 = vmul.f32 %v1242, %v1274
        %v1277 = vperm.slane %v1236, 0
        %v1279 = vmul.f32 %v1275, %v1277
        %v1281 = vperm.slane %v1237, 0
        %v1283 = vadd.f32 %v1279, %v1281
        %v1284 = vpack.c.bf16 %v1283, %v1283
        %v1285 = vld [vmem:[#allocation8] sm:$0xf]
        %v1286 = vld [vmem:[#allocation8 + $0x4] sm:$0xf]
        %v1287 = vld [vmem:[#allocation8 + $0x8] sm:$0xf]
        %v1288 = vld [vmem:[#allocation8 + $0xc] sm:$0xf]
        %v1289 = vld [vmem:[#allocation8 + $0x10] sm:$0xf]
        %v1290 = vld [vmem:[#allocation8 + $0x14] sm:$0xf]
        %v1291 = vld [vmem:[#allocation8 + $0x18] sm:$0xf]
        %v1292 = vld [vmem:[#allocation8 + $0x1c] sm:$0xf]
        %v1293 = vld [vmem:[%s11] sm:$0x1]
        %v1295 = vperm.slane %v1293, 0
        %v1305 = vunpack.c.l.b16 %v1285
        %v1306 = vunpack.c.l.b16 %v1286
        %v1307 = vunpack.c.l.b16 %v1287
        %v1308 = vunpack.c.l.b16 %v1288
        %v1309 = vunpack.c.l.b16 %v1289
        %v1310 = vunpack.c.l.b16 %v1290
        %v1311 = vunpack.c.l.b16 %v1291
        %v1312 = vunpack.c.l.b16 %v1292
        %v1313 = vpack.c.b16 %v1306, %v1305
        %v1314 = vpack.c.b16 %v1308, %v1307
        %v1315 = vpack.c.b16 %v1310, %v1309
        %v1316 = vpack.c.b16 %v1312, %v1311
        %v1322 = vsel %vm550, %v1284, 0
        %1324 = vmatpush.bf16.msra.mxu0 0
        %1325 = vmatpush.bf16.msra.mxu0 0
        %1326 = vmatpush.bf16.msra.mxu0 0
        %1327 = vmatpush.bf16.msra.mxu0 0
        %1328 = vmatpush.bf16.msra.mxu0 %v1316
        %1329 = vmatpush.bf16.msra.mxu0 %v1315
        %1330 = vmatpush.bf16.msra.mxu0 %v1314
        %1331 = vmatpush.bf16.msra.mxu0 %v1313
        %1332 = vmatmul.bf16.gmra.mxu0 %v1322
        %v1333 = vpop.f32.mrf.mxu0
        %v1334 = vadd.f32 %v1295, %v1333
        %v1335 = vpop.f32.mrf.mxu0
        %1336 = vdwg.mxu0
        %v1337 = vmax.f32 %v1334, 0.0
        %v1338 = vpack.c.bf16 %v1337, %v1337
        %v1339 = vld [vmem:[%s12] sm:$0xf]
        %v1340 = vld [vmem:[%s12 + $0x4] sm:$0xf]
        %v1341 = vld [vmem:[%s12 + $0x8] sm:$0xf]
        %v1342 = vld [vmem:[%s12 + $0xc] sm:$0xf]
        %v1343 = vld [vmem:[%s12 + $0x10] sm:$0xf]
        %v1344 = vld [vmem:[%s12 + $0x14] sm:$0xf]
        %v1345 = vld [vmem:[%s12 + $0x18] sm:$0xf]
        %v1346 = vld [vmem:[%s12 + $0x1c] sm:$0xf]
        %v1347 = vld [vmem:[%s12 + $0x20] sm:$0xf]
        %v1348 = vld [vmem:[%s12 + $0x24] sm:$0xf]
        %v1349 = vld [vmem:[%s12 + $0x28] sm:$0xf]
        %v1350 = vld [vmem:[%s12 + $0x2c] sm:$0xf]
        %v1351 = vld [vmem:[%s12 + $0x30] sm:$0xf]
        %v1352 = vld [vmem:[%s12 + $0x34] sm:$0xf]
        %v1353 = vld [vmem:[%s12 + $0x38] sm:$0xf]
        %v1354 = vld [vmem:[%s12 + $0x3c] sm:$0xf]
        %v1355 = vld [vmem:[%s13] sm:$0x1]
        %v1357 = vperm.slane %v1355, 0
        %v1375 = vunpack.c.l.b16 %v1339
        %v1376 = vunpack.c.l.b16 %v1340
        %v1377 = vunpack.c.l.b16 %v1341
        %v1378 = vunpack.c.l.b16 %v1342
        %v1379 = vunpack.c.l.b16 %v1343
        %v1380 = vunpack.c.l.b16 %v1344
        %v1381 = vunpack.c.l.b16 %v1345
        %v1382 = vunpack.c.l.b16 %v1346
        %v1383 = vunpack.c.l.b16 %v1347
        %v1384 = vunpack.c.l.b16 %v1348
        %v1385 = vunpack.c.l.b16 %v1349
        %v1386 = vunpack.c.l.b16 %v1350
        %v1387 = vunpack.c.l.b16 %v1351
        %v1388 = vunpack.c.l.b16 %v1352
        %v1389 = vunpack.c.l.b16 %v1353
        %v1390 = vunpack.c.l.b16 %v1354
        %v1391 = vpack.c.b16 %v1376, %v1375
        %v1392 = vpack.c.b16 %v1378, %v1377
        %v1393 = vpack.c.b16 %v1380, %v1379
        %v1394 = vpack.c.b16 %v1382, %v1381
        %v1395 = vpack.c.b16 %v1384, %v1383
        %v1396 = vpack.c.b16 %v1386, %v1385
        %v1397 = vpack.c.b16 %v1388, %v1387
        %v1398 = vpack.c.b16 %v1390, %v1389
        %1407 = vmatpush.bf16.msra.mxu0 %v1398
        %1408 = vmatpush.bf16.msra.mxu0 %v1397
        %1409 = vmatpush.bf16.msra.mxu0 %v1396
        %1410 = vmatpush.bf16.msra.mxu0 %v1395
        %1411 = vmatpush.bf16.msra.mxu0 %v1394
        %1412 = vmatpush.bf16.msra.mxu0 %v1393
        %1413 = vmatpush.bf16.msra.mxu0 %v1392
        %1414 = vmatpush.bf16.msra.mxu0 %v1391
        %1415 = vmatmul.bf16.gmra.mxu0 %v1338
        %v1416 = vpop.f32.mrf.mxu0
        %v1417 = vadd.f32 %v1357, %v1416
        %v1418 = vpop.f32.mrf.mxu0
        %1419 = vdwg.mxu0
        %v1420 = vadd.f32 %v1417, %v1235
        %1421 = vst.msk [vmem:[%s541] sm:$0xff] %vm550, %v1420
        %s1422 = sand.u32 %s345, 1
        %s1423 = scalar_lea.sflag [#allocation4], %s1422
        %s1424 = sand.u32 %s345, 1
        %s1425 = smul.addr %s1424, 8
        %s1426 = scalar_lea.vmem [#allocation10], %s1425
        // Predicated region
        $region93: #{tpu_custom_call.1} parent=75 // pred_check
          %p1427 = pneg %p355
        $region94: #{tpu_custom_call.1} parent=75 // pred_check_branch
          %1429 = sbr.rel (%p1427) target = $region96
        $region95: #{tpu_custom_call.1} parent=75 // pred_region
          %1431 = vsyncadd %s1423, 0
          %s1432 = smul.addr %s33, 8
          %s1433 = scalar_lea.hbm %s14, %s1432
          %s1435 = sshll.u32 %s1426, 4
          %s1436 = int_to_ptr.vmem [resolvable:$true] %s1435
          %s1437 = sshll.u32 %s1433, 4
          %s1438 = int_to_ptr.hbm [resolvable:$true] %s1437
          %1440 = dma.vmem_to_hbm [thread:$0]  %s1436, 128, %s1438, %s1423
        $region96: #{tpu_custom_call.1} parent=75 // pred_fallthru
          _
      $region76: #{tpu_custom_call.1} parent=5 // pred_fallthru
        _
      %p1441 = scmp.le.s32.totalorder 2, %s28
      // Predicated region
      $region97: #{tpu_custom_call.1} parent=5 // pred_check
        %p1442 = pneg %p1441
      $region98: #{tpu_custom_call.1} parent=5 // pred_check_branch
        %1444 = sbr.rel (%p1442) target = $region100
      $region99: #{tpu_custom_call.1} parent=5 // pred_region
        %s1445 = ssub.s32 %s28, 2
        // Predicated region
        $region101: #{tpu_custom_call.1} parent=99 // pred_check
          %p1446 = pneg %p361
        $region102: #{tpu_custom_call.1} parent=99 // pred_check_branch
          %1448 = sbr.rel (%p1446) target = $region104
        $region103: #{tpu_custom_call.1} parent=99 // pred_region
          %s1449 = sand.u32 %s346, 1
          %s1450 = scalar_lea.sflag [#allocation4], %s1449
          %s1451 = sand.u32 %s346, 1
          %s1452 = smul.addr %s1451, 8
          %s1453 = scalar_lea.vmem [#allocation10], %s1452
          %1455 = dma.done %s1450, 128
        $region104: #{tpu_custom_call.1} parent=99 // pred_fallthru
          _
      $region100: #{tpu_custom_call.1} parent=5 // pred_fallthru
        _
    $region6: #{tpu_custom_call.1} parent=1 // loop_footer
      %s32 = sadd.s32 1, %s28
    $region7: #{tpu_custom_call.1} parent=1 // loop_footer_branch
      %27 = sbr.rel target = $region3
    $region8: #{tpu_custom_call.1} parent=1 // loop_exit
      _
    %1456 = vsyncpa [#allocation3], 1
    %s1457 = scalar_lea.sflag [#allocation3], 1
    %1458 = vsyncpa %s1457, 1
    %1459 = vsyncpa [#allocation6], 1
    %1460 = vsyncpa [#allocation9], 1
    %1461 = vsyncpa [#allocation4], 1
    %s1462 = scalar_lea.sflag [#allocation4], 1
    %1463 = vsyncpa %s1462, 1

</llo_original>
